<compile_context>
chip_gen: v5e
topology: v5e:2x2
jax: 0.10.0
libtpu: 0.0.40
codegen_flags: <defaults>
</compile_context>

<pallas_src>
import jax
import jax.numpy as jnp
from jax.experimental import pallas as pl
from jax.experimental.pallas import tpu as pltpu


# ----------------------------------------------------------------------------
# Parameter init (deterministic, synthetic "DINO-like" ViT with 1 block)
# ----------------------------------------------------------------------------
def init_vit_params(key, *, C, P, D, S):
    cpp = C * P * P
    ks = jax.random.split(key, 8)
    init = lambda k, s: 0.02 * jax.random.normal(k, s, jnp.float32)
    return {
        "patch_w": init(ks[0], (cpp, D)),          # Conv2d(C, D, P, P) flattened
        "patch_b": jnp.zeros((1, D), jnp.float32),
        "cls":     init(ks[1], (1, D)),
        "pos":     init(ks[2], (S, D)),
        "ln1_g":   jnp.ones((1, D), jnp.float32),
        "ln1_b":   jnp.zeros((1, D), jnp.float32),
        "qkv_w":   init(ks[3], (D, 3 * D)),
        "qkv_b":   jnp.zeros((1, 3 * D), jnp.float32),
        "proj_w":  init(ks[4], (D, D)),
        "proj_b":  jnp.zeros((1, D), jnp.float32),
        "ln2_g":   jnp.ones((1, D), jnp.float32),
        "ln2_b":   jnp.zeros((1, D), jnp.float32),
        "mlp_w1":  init(ks[5], (D, 4 * D)),
        "mlp_b1":  jnp.zeros((1, 4 * D), jnp.float32),
        "mlp_w2":  init(ks[6], (4 * D, D)),
        "mlp_b2":  jnp.zeros((1, D), jnp.float32),
        "lnf_g":   jnp.ones((1, D), jnp.float32),
        "lnf_b":   jnp.zeros((1, D), jnp.float32),
    }


# ----------------------------------------------------------------------------
# Small helpers (tiling / buffering / VMEM sizing)
# ----------------------------------------------------------------------------
def _choose_frames_per_step(n_frames, tokens_per_frame, max_rows=1024):
    """Pick frames-per-grid-step F: large token slab (FS = F * tokens_per_frame)
    to amortize grid overhead and MXU weight pushes, while keeping
    G = n_frames / F >= 4 (pipelining) and even (v7x megacore balance)."""
    divisors = [f for f in range(1, n_frames + 1) if n_frames % f == 0]

    def score(f):
        g = n_frames // f
        fs = f * tokens_per_frame
        return (fs <= max_rows, g >= 4, g % 2 == 0, fs % 8 == 0, fs)

    return max(divisors, key=score)


def _choose_time_chunk(T, max_chunk=8):
    """Largest divisor of T that is <= max_chunk (frames per motion grid step)."""
    for tc in range(min(T, max_chunk), 0, -1):
        if T % tc == 0:
            return tc
    return 1


def _vmem_limit_bytes():
    """~75% of physical VMEM, capped at 96 MiB (v5e/v6e: 96 MiB, v7x: 48 MiB)."""
    cap = None
    try:
        cap = getattr(pltpu.get_tpu_info(), "vmem_capacity_bytes", None)
    except Exception:
        cap = None
    if not cap:
        cap = 64 * 1024 * 1024
    return int(min(cap * 3 // 4, 96 * 1024 * 1024))


def _const_spec(shape):
    """Grid-invariant operand: full-array block, single-buffered if supported."""
    ndim = len(shape)

    def idx(n):
        return (0,) * ndim

    if hasattr(pl, "Buffered"):
        try:
            return pl.BlockSpec(shape, idx, pipeline_mode=pl.Buffered(1))
        except TypeError:
            pass
    return pl.BlockSpec(shape, idx)


# ----------------------------------------------------------------------------
# Visual path: batched per-frame ViT (patch-embed + attention + MLP + final LN)
# ----------------------------------------------------------------------------
def visual_forward(x, params, *, P, D, NH, frames_per_step=None):
    B, C, T, H, W = x.shape
    assert H % P == 0 and W % P == 0
    hp, wp = H // P, W // P
    npatch = hp * wp
    S = npatch + 1
    cpp = C * P * P
    N = B * T
    hd = D // NH
    scale = hd ** -0.5
    # NOTE: production shapes should use D % 128 == 0 (DINO-B: D=768 is fine);
    # smaller lane widths degrade to masked stores / low MXU utilization.

    F = (frames_per_step if frames_per_step is not None
         else _choose_frames_per_step(N, S))
    assert N % F == 0
    G = N // F                 # grid steps
    FP = F * npatch            # patch rows per grid step
    FS = F * S                 # token rows per grid step

    bf16 = jnp.bfloat16

    # --- wrapper-side patchify (one XLA pass; bf16 halves streamed bytes) ---
    # TODO(synk): fold the patchify into the kernel (index the raw video per
    # (b,t) block) to remove this extra HBM round trip.
    frames = jnp.transpose(x, (0, 2, 1, 3, 4)).reshape(N, C, H, W)
    patches = frames.reshape(N, C, hp, P, wp, P)
    patches = jnp.transpose(patches, (0, 2, 4, 1, 3, 5)).reshape(G, FP, cpp)
    patches = patches.astype(bf16)

    # matmul operands in bf16 (MXU-native rate), accumulate in f32
    patch_w = params["patch_w"].astype(bf16)
    qkv_w = params["qkv_w"].astype(bf16)
    proj_w = params["proj_w"].astype(bf16)
    mlp_w1 = params["mlp_w1"].astype(bf16)
    mlp_w2 = params["mlp_w2"].astype(bf16)

    cls_pos = params["cls"] + params["pos"][0:1]     # (1, D)
    pos_patch = params["pos"][1:]                    # (npatch, D), added per frame

    def vit_kernel(patch_ref, pw, pb, clsp, posp, l1g, l1b, qkvw, qkvb,
                   prw, prb, l2g, l2b, w1, b1, w2, b2, lfg, lfb,
                   out_ref, tok_ref):
        def layer_norm(v, g_ref, b_ref):
            # eps=1e-6 (DINO convention; PyTorch default would be 1e-5)
            mu = jnp.mean(v, axis=-1, keepdims=True)
            var = jnp.mean(jnp.square(v - mu), axis=-1, keepdims=True)
            return (v - mu) * jax.lax.rsqrt(var + 1e-6) * g_ref[...] + b_ref[...]

        def gelu(v):
            # tanh approximation (== nn.GELU(approximate='tanh')); EUP path.
            return 0.5 * v * (1.0 + jnp.tanh(
                0.7978845608028654 * (v + 0.044715 * v * v * v)))

        # patch embedding (Conv2d(C, D, P, stride=P) == patchify + matmul)
        emb = jnp.dot(patch_ref[...], pw[...],
                      preferred_element_type=jnp.float32) + pb[...]

        # assemble token slab: per frame [cls ; patches + pos]
        for f in range(F):
            tok_ref[f * S:f * S + 1, :] = clsp[...]
            tok_ref[f * S + 1:(f + 1) * S, :] = (
                emb[f * npatch:(f + 1) * npatch, :] + posp[...])
        xt = tok_ref[...]                                     # (FS, D) f32

        # --- multi-head self-attention: per-frame (no cross-frame waste), ----
        # --- while qkv / proj / mlp stay as single big fused matmuls. --------
        h1 = layer_norm(xt, l1g, l1b)
        qkv = jnp.dot(h1.astype(bf16), qkvw[...],
                      preferred_element_type=jnp.float32) + qkvb[...]
        # fold 1/sqrt(hd) into q once (O(FS*D) instead of O(FS^2) per head)
        q_all = (qkv[:, 0:D] * scale).astype(bf16)
        k_all = qkv[:, D:2 * D].astype(bf16)
        v_all = qkv[:, 2 * D:3 * D].astype(bf16)

        frame_outs = []
        for f in range(F):                                    # static frame loop
            r0, r1 = f * S, (f + 1) * S
            head_outs = []
            for hh in range(NH):                              # static head loop
                c0, c1 = hh * hd, (hh + 1) * hd
                qh = q_all[r0:r1, c0:c1]
                kh = k_all[r0:r1, c0:c1]
                vh = v_all[r0:r1, c0:c1]
                s = jax.lax.dot_general(qh, kh, (((1,), (1,)), ((), ())),
                                        preferred_element_type=jnp.float32)
                m = jnp.max(s, axis=-1, keepdims=True)
                e = jnp.exp(s - m)
                p = e * pl.reciprocal(jnp.sum(e, axis=-1, keepdims=True),
                                      approx=True)
                head_outs.append(jnp.dot(p.astype(bf16), vh,
                                         preferred_element_type=jnp.float32))
            # lane-dense head concat (no hd-wide masked column stores)
            frame_outs.append(jnp.concatenate(head_outs, axis=-1))   # (S, D)
        attn = jnp.concatenate(frame_outs, axis=0)                   # (FS, D)

        xt = xt + jnp.dot(attn.astype(bf16), prw[...],
                          preferred_element_type=jnp.float32) + prb[...]

        # --- MLP --------------------------------------------------------------
        h2 = layer_norm(xt, l2g, l2b)
        mlp = gelu(jnp.dot(h2.astype(bf16), w1[...],
                           preferred_element_type=jnp.float32) + b1[...])
        xt = xt + jnp.dot(mlp.astype(bf16), w2[...],
                          preferred_element_type=jnp.float32) + b2[...]

        # final norm (DINO get_intermediate_layers applies self.norm)
        out_ref[...] = layer_norm(xt, lfg, lfb).astype(out_ref.dtype)

    in_specs = [
        pl.BlockSpec((None, FP, cpp), lambda n: (n, 0, 0)),   # streamed patches
        _const_spec((cpp, D)), _const_spec((1, D)),           # patch w/b
        _const_spec((1, D)), _const_spec((npatch, D)),        # cls+pos0, pos
        _const_spec((1, D)), _const_spec((1, D)),             # ln1
        _const_spec((D, 3 * D)), _const_spec((1, 3 * D)),     # qkv
        _const_spec((D, D)), _const_spec((1, D)),             # proj
        _const_spec((1, D)), _const_spec((1, D)),             # ln2
        _const_spec((D, 4 * D)), _const_spec((1, 4 * D)),     # mlp w1/b1
        _const_spec((4 * D, D)), _const_spec((1, D)),         # mlp w2/b2
        _const_spec((1, D)), _const_spec((1, D)),             # final ln
    ]
    out_spec = pl.BlockSpec((None, FS, D), lambda n: (n, 0, 0))

    feats = pl.pallas_call(
        vit_kernel,
        out_shape=jax.ShapeDtypeStruct((G, FS, D), bf16),     # bf16 writeback
        grid=(G,),
        in_specs=in_specs,
        out_specs=out_spec,
        scratch_shapes=[pltpu.VMEM((FS, D), jnp.float32)],    # token slab
        compiler_params=pltpu.CompilerParams(
            dimension_semantics=("parallel",),
            vmem_limit_bytes=_vmem_limit_bytes()),
    )(patches, patch_w, params["patch_b"], cls_pos, pos_patch,
      params["ln1_g"], params["ln1_b"], qkv_w, params["qkv_b"],
      proj_w, params["proj_b"], params["ln2_g"], params["ln2_b"],
      mlp_w1, params["mlp_b1"], mlp_w2, params["mlp_b2"],
      params["lnf_g"], params["lnf_b"])

    # '(b t) p d -> b t p d'
    return feats.reshape(B, T, S, D)


# ----------------------------------------------------------------------------
# Motion path: per consecutive frame pair, dense 2-channel flow field
# ----------------------------------------------------------------------------
def motion_forward(x, *, time_chunk=None, out_dtype=jnp.bfloat16):
    B, C, T, H, W = x.shape
    assert C == 3, "motion path expects 3-channel RGB frames"
    Tc = time_chunk if time_chunk is not None else _choose_time_chunk(T)
    assert T % Tc == 0
    n_chunks = T // Tc

    def motion_kernel(x_ref, flow_ref, prev_ref):
        c = pl.program_id(1)

        col = jax.lax.broadcasted_iota(jnp.int32, (H, W), 1)
        row = jax.lax.broadcasted_iota(jnp.int32, (H, W), 0)
        sx = jnp.where((col == 0) | (col == W - 1), 1.0, 0.5)
        sy = jnp.where((row == 0) | (row == H - 1), 1.0, 0.5)

        def to_gray(j):
            # de-normalize to [0, 255] and convert to grayscale, once per frame.
            # TODO(synk): `denomalizing_img` is an external helper; standard
            # ImageNet de-normalization + cv2 RGB2GRAY weights assumed here.
            r = jnp.clip((x_ref[0, j] * 0.229 + 0.485) * 255.0, 0.0, 255.0)
            g = jnp.clip((x_ref[1, j] * 0.224 + 0.456) * 255.0, 0.0, 255.0)
            b = jnp.clip((x_ref[2, j] * 0.225 + 0.406) * 255.0, 0.0, 255.0)
            return 0.299 * r + 0.587 * g + 0.114 * b          # (H, W)

        def flow_pair(g1, g2):
            # shift-based central differences with replicated borders.
            # TODO(synk): pltpu.roll could move these shifts to the XLU slot.
            right = jnp.concatenate([g1[:, 1:], g1[:, W - 1:W]], axis=1)
            left = jnp.concatenate([g1[:, 0:1], g1[:, :W - 1]], axis=1)
            down = jnp.concatenate([g1[1:, :], g1[H - 1:H, :]], axis=0)
            up = jnp.concatenate([g1[0:1, :], g1[:H - 1, :]], axis=0)
            gx = (right - left) * sx
            gy = (down - up) * sy
            gt = g2 - g1
            inv = pl.reciprocal(gx * gx + gy * gy + 1e-3, approx=True)
            # TODO(synk): cv2 SparseToDense / pretrained RAFT have no Pallas
            # equivalent; single-step Lucas-Kanade (normal-flow) proxy.
            return -gt * gx * inv, -gt * gy * inv

        prev = None
        for j in range(Tc):                                   # static chunk loop
            gray = to_gray(j)
            if j == 0:
                # pair with the carried last frame of the previous chunk
                @pl.when(c > 0)
                def _():
                    u, v = flow_pair(prev_ref[...], gray)
                    flow_ref[0, 0, :, :] = u.astype(flow_ref.dtype)
                    flow_ref[0, 1, :, :] = v.astype(flow_ref.dtype)

                @pl.when(c == 0)
                def _():
                    # global t == 0: zero pad row (sliced off in the wrapper)
                    flow_ref[0, 0, :, :] = jnp.zeros((H, W), flow_ref.dtype)
                    flow_ref[0, 1, :, :] = jnp.zeros((H, W), flow_ref.dtype)
            else:
                u, v = flow_pair(prev, gray)
                flow_ref[j, 0, :, :] = u.astype(flow_ref.dtype)
                flow_ref[j, 1, :, :] = v.astype(flow_ref.dtype)
            prev = gray
        # carry last grayscale frame of the chunk (chunk axis is sequential)
        prev_ref[...] = prev

    flow_padded = pl.pallas_call(
        motion_kernel,
        # padded row t holds flow(frame t-1 -> frame t); row 0 is a zero pad so
        # every grid step writes its full, chunk-aligned output block.
        out_shape=jax.ShapeDtypeStruct((B, T, 2, H, W), out_dtype),
        grid=(B, n_chunks),
        in_specs=[
            # index the original (B,C,T,H,W) tensor directly, Tc frames a step
            pl.BlockSpec((None, C, Tc, H, W), lambda b, c: (b, 0, c, 0, 0)),
        ],
        out_specs=pl.BlockSpec((None, Tc, 2, H, W),
                               lambda b, c: (b, c, 0, 0, 0)),
        scratch_shapes=[pltpu.VMEM((H, W), jnp.float32)],     # prev gray frame
        compiler_params=pltpu.CompilerParams(
            dimension_semantics=("parallel", "arbitrary")),
    )(x)
    return flow_padded[:, 1:]                                 # (B, T-1, 2, H, W)


# ----------------------------------------------------------------------------
# MOOSE_Encoder.forward
# ----------------------------------------------------------------------------
def moose_encoder_forward(x, params, *, P, D, NH):
    assert x.ndim == 5, "Input should have len = 5, represent (b, c, t, w, h)"
    visual_embeddings = visual_forward(x, params, P=P, D=D, NH=NH)
    motion_embeddings = motion_forward(x)
    return visual_embeddings, motion_embeddings


if __name__ == "__main__":
    key = jax.random.PRNGKey(0)
    B, C, T, H, W = 2, 3, 4, 16, 16     # small (b, c, t, w, h)
    P, D, NH = 8, 64, 4                 # patch size, hidden dim, heads
    S = (H // P) * (W // P) + 1         # tokens = num_patches + cls

    k_in, k_par = jax.random.split(key)
    x = jax.random.normal(k_in, (B, C, T, H, W), jnp.float32)
    params = init_vit_params(k_par, C=C, P=P, D=D, S=S)

    vis, mot = moose_encoder_forward(x, params, P=P, D=D, NH=NH)
    jax.block_until_ready((vis, mot))

    assert vis.shape == (B, T, S, D)
    assert mot.shape == (B, T - 1, 2, H, W)
    print("KERNEL_OK")
</pallas_src>

<mosaic_0001>
module attributes {stable_mosaic.version = 11 : i64} {
  func.func @vit_kernel(%arg0: i32, %arg1: memref<1x8x192xbf16, #tpu.memory_space<vmem>>, %arg2: memref<192x64xbf16, #tpu.memory_space<vmem>>, %arg3: memref<1x64xf32, #tpu.memory_space<vmem>>, %arg4: memref<1x64xf32, #tpu.memory_space<vmem>>, %arg5: memref<4x64xf32, #tpu.memory_space<vmem>>, %arg6: memref<1x64xf32, #tpu.memory_space<vmem>>, %arg7: memref<1x64xf32, #tpu.memory_space<vmem>>, %arg8: memref<64x192xbf16, #tpu.memory_space<vmem>>, %arg9: memref<1x192xf32, #tpu.memory_space<vmem>>, %arg10: memref<64x64xbf16, #tpu.memory_space<vmem>>, %arg11: memref<1x64xf32, #tpu.memory_space<vmem>>, %arg12: memref<1x64xf32, #tpu.memory_space<vmem>>, %arg13: memref<1x64xf32, #tpu.memory_space<vmem>>, %arg14: memref<64x256xbf16, #tpu.memory_space<vmem>>, %arg15: memref<1x256xf32, #tpu.memory_space<vmem>>, %arg16: memref<256x64xbf16, #tpu.memory_space<vmem>>, %arg17: memref<1x64xf32, #tpu.memory_space<vmem>>, %arg18: memref<1x64xf32, #tpu.memory_space<vmem>>, %arg19: memref<1x64xf32, #tpu.memory_space<vmem>>, %arg20: memref<1x10x64xbf16, #tpu.memory_space<vmem>>, %arg21: memref<10x64xf32, #tpu.memory_space<vmem>>) attributes {dimension_semantics = [#tpu.dimension_semantics<parallel>], iteration_bounds = array<i64: 4>, scalar_prefetch = 0 : i64, scratch_operands = 1 : i64, tpu.core_type = #tpu.core_type<tc>, window_params = [{transform_indices = @transform_0, window_bounds = array<i64: 1, 8, 192>}, {pipeline_mode = #tpu.pipeline_mode<synchronous>, transform_indices = @transform_1, window_bounds = array<i64: 192, 64>}, {pipeline_mode = #tpu.pipeline_mode<synchronous>, transform_indices = @transform_2, window_bounds = array<i64: 1, 64>}, {pipeline_mode = #tpu.pipeline_mode<synchronous>, transform_indices = @transform_3, window_bounds = array<i64: 1, 64>}, {pipeline_mode = #tpu.pipeline_mode<synchronous>, transform_indices = @transform_4, window_bounds = array<i64: 4, 64>}, {pipeline_mode = #tpu.pipeline_mode<synchronous>, transform_indices = @transform_5, window_bounds = array<i64: 1, 64>}, {pipeline_mode = #tpu.pipeline_mode<synchronous>, transform_indices = @transform_6, window_bounds = array<i64: 1, 64>}, {pipeline_mode = #tpu.pipeline_mode<synchronous>, transform_indices = @transform_7, window_bounds = array<i64: 64, 192>}, {pipeline_mode = #tpu.pipeline_mode<synchronous>, transform_indices = @transform_8, window_bounds = array<i64: 1, 192>}, {pipeline_mode = #tpu.pipeline_mode<synchronous>, transform_indices = @transform_9, window_bounds = array<i64: 64, 64>}, {pipeline_mode = #tpu.pipeline_mode<synchronous>, transform_indices = @transform_10, window_bounds = array<i64: 1, 64>}, {pipeline_mode = #tpu.pipeline_mode<synchronous>, transform_indices = @transform_11, window_bounds = array<i64: 1, 64>}, {pipeline_mode = #tpu.pipeline_mode<synchronous>, transform_indices = @transform_12, window_bounds = array<i64: 1, 64>}, {pipeline_mode = #tpu.pipeline_mode<synchronous>, transform_indices = @transform_13, window_bounds = array<i64: 64, 256>}, {pipeline_mode = #tpu.pipeline_mode<synchronous>, transform_indices = @transform_14, window_bounds = array<i64: 1, 256>}, {pipeline_mode = #tpu.pipeline_mode<synchronous>, transform_indices = @transform_15, window_bounds = array<i64: 256, 64>}, {pipeline_mode = #tpu.pipeline_mode<synchronous>, transform_indices = @transform_16, window_bounds = array<i64: 1, 64>}, {pipeline_mode = #tpu.pipeline_mode<synchronous>, transform_indices = @transform_17, window_bounds = array<i64: 1, 64>}, {pipeline_mode = #tpu.pipeline_mode<synchronous>, transform_indices = @transform_18, window_bounds = array<i64: 1, 64>}, {transform_indices = @transform_19, window_bounds = array<i64: 1, 10, 64>}]} {
    %c0 = arith.constant 0 : index
    %c0_0 = arith.constant 0 : index
    %c0_1 = arith.constant 0 : index
    %0 = vector.load %arg1[%c0, %c0_0, %c0_1] : memref<1x8x192xbf16, #tpu.memory_space<vmem>>, vector<1x8x192xbf16>
    %1 = vector.shape_cast %0 : vector<1x8x192xbf16> to vector<8x192xbf16>
    %c0_2 = arith.constant 0 : index
    %c0_3 = arith.constant 0 : index
    %2 = vector.load %arg2[%c0_2, %c0_3] : memref<192x64xbf16, #tpu.memory_space<vmem>>, vector<192x64xbf16>
    %cst = arith.constant dense<0.000000e+00> : vector<8x64xf32>
    %3 = tpu.matmul %1, %2, %cst {dimension_numbers = #tpu.dot_dimension_numbers<[1], [0], [0], [1], [0, 0, 1, 1], [], []>} : vector<8x192xbf16>, vector<192x64xbf16>, vector<8x64xf32> -> vector<8x64xf32>
    %c0_4 = arith.constant 0 : index
    %c0_5 = arith.constant 0 : index
    %4 = vector.load %arg3[%c0_4, %c0_5] : memref<1x64xf32, #tpu.memory_space<vmem>>, vector<1x64xf32>
    %5 = vector.broadcast %4 : vector<1x64xf32> to vector<8x64xf32>
    %6 = arith.addf %3, %5 : vector<8x64xf32>
    %c0_6 = arith.constant 0 : index
    %c0_7 = arith.constant 0 : index
    %7 = vector.load %arg4[%c0_6, %c0_7] : memref<1x64xf32, #tpu.memory_space<vmem>>, vector<1x64xf32>
    %c0_8 = arith.constant 0 : index
    %c0_9 = arith.constant 0 : index
    %8 = vector.load %arg21[%c0_8, %c0_9] : memref<10x64xf32, #tpu.memory_space<vmem>>, vector<1x64xf32>
    tpu.vector_store %arg21[%c0_8, %c0_9], %7 {strides = array<i32>} : memref<10x64xf32, #tpu.memory_space<vmem>>, vector<1x64xf32>,
    %9 = vector.extract_strided_slice %6 {offsets = [0, 0], sizes = [4, 64], strides = [1, 1]} : vector<8x64xf32> to vector<4x64xf32>
    %c0_10 = arith.constant 0 : index
    %c0_11 = arith.constant 0 : index
    %10 = vector.load %arg5[%c0_10, %c0_11] : memref<4x64xf32, #tpu.memory_space<vmem>>, vector<4x64xf32>
    %11 = arith.addf %9, %10 : vector<4x64xf32>
    %c1 = arith.constant 1 : index
    %c0_12 = arith.constant 0 : index
    %12 = vector.load %arg21[%c1, %c0_12] : memref<10x64xf32, #tpu.memory_space<vmem>>, vector<4x64xf32>
    tpu.vector_store %arg21[%c1, %c0_12], %11 {strides = array<i32>} : memref<10x64xf32, #tpu.memory_space<vmem>>, vector<4x64xf32>,
    %c0_13 = arith.constant 0 : index
    %c0_14 = arith.constant 0 : index
    %13 = vector.load %arg4[%c0_13, %c0_14] : memref<1x64xf32, #tpu.memory_space<vmem>>, vector<1x64xf32>
    %c5 = arith.constant 5 : index
    %c0_15 = arith.constant 0 : index
    %14 = vector.load %arg21[%c5, %c0_15] : memref<10x64xf32, #tpu.memory_space<vmem>>, vector<1x64xf32>
    tpu.vector_store %arg21[%c5, %c0_15], %13 {strides = array<i32>} : memref<10x64xf32, #tpu.memory_space<vmem>>, vector<1x64xf32>,
    %15 = vector.extract_strided_slice %6 {offsets = [4, 0], sizes = [4, 64], strides = [1, 1]} : vector<8x64xf32> to vector<4x64xf32>
    %c0_16 = arith.constant 0 : index
    %c0_17 = arith.constant 0 : index
    %16 = vector.load %arg5[%c0_16, %c0_17] : memref<4x64xf32, #tpu.memory_space<vmem>>, vector<4x64xf32>
    %17 = arith.addf %15, %16 : vector<4x64xf32>
    %c6 = arith.constant 6 : index
    %c0_18 = arith.constant 0 : index
    %18 = vector.load %arg21[%c6, %c0_18] : memref<10x64xf32, #tpu.memory_space<vmem>>, vector<4x64xf32>
    tpu.vector_store %arg21[%c6, %c0_18], %17 {strides = array<i32>} : memref<10x64xf32, #tpu.memory_space<vmem>>, vector<4x64xf32>,
    %c0_19 = arith.constant 0 : index
    %c0_20 = arith.constant 0 : index
    %19 = vector.load %arg21[%c0_19, %c0_20] : memref<10x64xf32, #tpu.memory_space<vmem>>, vector<10x64xf32>
    %cst_21 = arith.constant dense<0.000000e+00> : vector<10xf32>
    %20 = vector.multi_reduction <add>, %19, %cst_21 [1] : vector<10x64xf32> to vector<10xf32>
    %21 = vector.shape_cast %20 : vector<10xf32> to vector<10x1xf32>
    %cst_22 = arith.constant 6.400000e+01 : f32
    %22 = vector.broadcast %cst_22 : f32 to vector<10x1xf32>
    %23 = arith.divf %21, %22 : vector<10x1xf32>
    %24 = vector.broadcast %23 : vector<10x1xf32> to vector<10x64xf32>
    %25 = arith.subf %19, %24 : vector<10x64xf32>
    %26 = arith.mulf %25, %25 : vector<10x64xf32>
    %cst_23 = arith.constant dense<0.000000e+00> : vector<10xf32>
    %27 = vector.multi_reduction <add>, %26, %cst_23 [1] : vector<10x64xf32> to vector<10xf32>
    %28 = vector.shape_cast %27 : vector<10xf32> to vector<10x1xf32>
    %cst_24 = arith.constant 6.400000e+01 : f32
    %29 = vector.broadcast %cst_24 : f32 to vector<10x1xf32>
    %30 = arith.divf %28, %29 : vector<10x1xf32>
    %31 = vector.broadcast %23 : vector<10x1xf32> to vector<10x64xf32>
    %32 = arith.subf %19, %31 : vector<10x64xf32>
    %cst_25 = arith.constant 9.99999997E-7 : f32
    %33 = vector.broadcast %cst_25 : f32 to vector<10x1xf32>
    %34 = arith.addf %30, %33 : vector<10x1xf32>
    %35 = math.rsqrt %34 : vector<10x1xf32>
    %36 = vector.broadcast %35 : vector<10x1xf32> to vector<10x64xf32>
    %37 = arith.mulf %32, %36 : vector<10x64xf32>
    %c0_26 = arith.constant 0 : index
    %c0_27 = arith.constant 0 : index
    %38 = vector.load %arg6[%c0_26, %c0_27] : memref<1x64xf32, #tpu.memory_space<vmem>>, vector<1x64xf32>
    %39 = vector.broadcast %38 : vector<1x64xf32> to vector<10x64xf32>
    %40 = arith.mulf %37, %39 : vector<10x64xf32>
    %c0_28 = arith.constant 0 : index
    %c0_29 = arith.constant 0 : index
    %41 = vector.load %arg7[%c0_28, %c0_29] : memref<1x64xf32, #tpu.memory_space<vmem>>, vector<1x64xf32>
    %42 = vector.broadcast %41 : vector<1x64xf32> to vector<10x64xf32>
    %43 = arith.addf %40, %42 : vector<10x64xf32>
    %44 = arith.truncf %43 : vector<10x64xf32> to vector<10x64xbf16>
    %c0_30 = arith.constant 0 : index
    %c0_31 = arith.constant 0 : index
    %45 = vector.load %arg8[%c0_30, %c0_31] : memref<64x192xbf16, #tpu.memory_space<vmem>>, vector<64x192xbf16>
    %cst_32 = arith.constant dense<0.000000e+00> : vector<10x192xf32>
    %46 = tpu.matmul %44, %45, %cst_32 {dimension_numbers = #tpu.dot_dimension_numbers<[1], [0], [0], [1], [0, 0, 1, 1], [], []>} : vector<10x64xbf16>, vector<64x192xbf16>, vector<10x192xf32> -> vector<10x192xf32>
    %c0_33 = arith.constant 0 : index
    %c0_34 = arith.constant 0 : index
    %47 = vector.load %arg9[%c0_33, %c0_34] : memref<1x192xf32, #tpu.memory_space<vmem>>, vector<1x192xf32>
    %48 = vector.broadcast %47 : vector<1x192xf32> to vector<10x192xf32>
    %49 = arith.addf %46, %48 : vector<10x192xf32>
    %50 = vector.extract_strided_slice %49 {offsets = [0, 0], sizes = [10, 64], strides = [1, 1]} : vector<10x192xf32> to vector<10x64xf32>
    %cst_35 = arith.constant 2.500000e-01 : f32
    %51 = vector.broadcast %cst_35 : f32 to vector<10x64xf32>
    %52 = arith.mulf %50, %51 : vector<10x64xf32>
    %53 = arith.truncf %52 : vector<10x64xf32> to vector<10x64xbf16>
    %54 = vector.extract_strided_slice %49 {offsets = [0, 64], sizes = [10, 64], strides = [1, 1]} : vector<10x192xf32> to vector<10x64xf32>
    %55 = arith.truncf %54 : vector<10x64xf32> to vector<10x64xbf16>
    %56 = vector.extract_strided_slice %49 {offsets = [0, 128], sizes = [10, 64], strides = [1, 1]} : vector<10x192xf32> to vector<10x64xf32>
    %57 = arith.truncf %56 : vector<10x64xf32> to vector<10x64xbf16>
    %58 = vector.extract_strided_slice %53 {offsets = [0, 0], sizes = [5, 16], strides = [1, 1]} : vector<10x64xbf16> to vector<5x16xbf16>
    %59 = vector.extract_strided_slice %55 {offsets = [0, 0], sizes = [5, 16], strides = [1, 1]} : vector<10x64xbf16> to vector<5x16xbf16>
    %60 = vector.extract_strided_slice %57 {offsets = [0, 0], sizes = [5, 16], strides = [1, 1]} : vector<10x64xbf16> to vector<5x16xbf16>
    %cst_36 = arith.constant dense<0.000000e+00> : vector<5x5xf32>
    %61 = tpu.matmul %58, %59, %cst_36 {dimension_numbers = #tpu.dot_dimension_numbers<[1], [1], [0], [0], [0, 0, 1, 0], [], []>} : vector<5x16xbf16>, vector<5x16xbf16>, vector<5x5xf32> -> vector<5x5xf32>
    %cst_37 = arith.constant dense<0xFF800000> : vector<5xf32>
    %62 = vector.multi_reduction <maximumf>, %61, %cst_37 [1] : vector<5x5xf32> to vector<5xf32>
    %63 = vector.shape_cast %62 : vector<5xf32> to vector<5x1xf32>
    %64 = vector.broadcast %63 : vector<5x1xf32> to vector<5x5xf32>
    %65 = arith.subf %61, %64 : vector<5x5xf32>
    %66 = math.exp %65 : vector<5x5xf32>
    %cst_38 = arith.constant dense<0.000000e+00> : vector<5xf32>
    %67 = vector.multi_reduction <add>, %66, %cst_38 [1] : vector<5x5xf32> to vector<5xf32>
    %68 = vector.shape_cast %67 : vector<5xf32> to vector<5x1xf32>
    %69 = tpu.reciprocal %68 {approx = true} : vector<5x1xf32> -> vector<5x1xf32>
    %70 = vector.broadcast %69 : vector<5x1xf32> to vector<5x5xf32>
    %71 = arith.mulf %66, %70 : vector<5x5xf32>
    %72 = arith.truncf %71 : vector<5x5xf32> to vector<5x5xbf16>
    %cst_39 = arith.constant dense<0.000000e+00> : vector<5x16xf32>
    %73 = tpu.matmul %72, %60, %cst_39 {dimension_numbers = #tpu.dot_dimension_numbers<[1], [0], [0], [1], [0, 0, 1, 1], [], []>} : vector<5x5xbf16>, vector<5x16xbf16>, vector<5x16xf32> -> vector<5x16xf32>
    %74 = vector.extract_strided_slice %53 {offsets = [0, 16], sizes = [5, 16], strides = [1, 1]} : vector<10x64xbf16> to vector<5x16xbf16>
    %75 = vector.extract_strided_slice %55 {offsets = [0, 16], sizes = [5, 16], strides = [1, 1]} : vector<10x64xbf16> to vector<5x16xbf16>
    %76 = vector.extract_strided_slice %57 {offsets = [0, 16], sizes = [5, 16], strides = [1, 1]} : vector<10x64xbf16> to vector<5x16xbf16>
    %cst_40 = arith.constant dense<0.000000e+00> : vector<5x5xf32>
    %77 = tpu.matmul %74, %75, %cst_40 {dimension_numbers = #tpu.dot_dimension_numbers<[1], [1], [0], [0], [0, 0, 1, 0], [], []>} : vector<5x16xbf16>, vector<5x16xbf16>, vector<5x5xf32> -> vector<5x5xf32>
    %cst_41 = arith.constant dense<0xFF800000> : vector<5xf32>
    %78 = vector.multi_reduction <maximumf>, %77, %cst_41 [1] : vector<5x5xf32> to vector<5xf32>
    %79 = vector.shape_cast %78 : vector<5xf32> to vector<5x1xf32>
    %80 = vector.broadcast %79 : vector<5x1xf32> to vector<5x5xf32>
    %81 = arith.subf %77, %80 : vector<5x5xf32>
    %82 = math.exp %81 : vector<5x5xf32>
    %cst_42 = arith.constant dense<0.000000e+00> : vector<5xf32>
    %83 = vector.multi_reduction <add>, %82, %cst_42 [1] : vector<5x5xf32> to vector<5xf32>
    %84 = vector.shape_cast %83 : vector<5xf32> to vector<5x1xf32>
    %85 = tpu.reciprocal %84 {approx = true} : vector<5x1xf32> -> vector<5x1xf32>
    %86 = vector.broadcast %85 : vector<5x1xf32> to vector<5x5xf32>
    %87 = arith.mulf %82, %86 : vector<5x5xf32>
    %88 = arith.truncf %87 : vector<5x5xf32> to vector<5x5xbf16>
    %cst_43 = arith.constant dense<0.000000e+00> : vector<5x16xf32>
    %89 = tpu.matmul %88, %76, %cst_43 {dimension_numbers = #tpu.dot_dimension_numbers<[1], [0], [0], [1], [0, 0, 1, 1], [], []>} : vector<5x5xbf16>, vector<5x16xbf16>, vector<5x16xf32> -> vector<5x16xf32>
    %90 = vector.extract_strided_slice %53 {offsets = [0, 32], sizes = [5, 16], strides = [1, 1]} : vector<10x64xbf16> to vector<5x16xbf16>
    %91 = vector.extract_strided_slice %55 {offsets = [0, 32], sizes = [5, 16], strides = [1, 1]} : vector<10x64xbf16> to vector<5x16xbf16>
    %92 = vector.extract_strided_slice %57 {offsets = [0, 32], sizes = [5, 16], strides = [1, 1]} : vector<10x64xbf16> to vector<5x16xbf16>
    %cst_44 = arith.constant dense<0.000000e+00> : vector<5x5xf32>
    %93 = tpu.matmul %90, %91, %cst_44 {dimension_numbers = #tpu.dot_dimension_numbers<[1], [1], [0], [0], [0, 0, 1, 0], [], []>} : vector<5x16xbf16>, vector<5x16xbf16>, vector<5x5xf32> -> vector<5x5xf32>
    %cst_45 = arith.constant dense<0xFF800000> : vector<5xf32>
    %94 = vector.multi_reduction <maximumf>, %93, %cst_45 [1] : vector<5x5xf32> to vector<5xf32>
    %95 = vector.shape_cast %94 : vector<5xf32> to vector<5x1xf32>
    %96 = vector.broadcast %95 : vector<5x1xf32> to vector<5x5xf32>
    %97 = arith.subf %93, %96 : vector<5x5xf32>
    %98 = math.exp %97 : vector<5x5xf32>
    %cst_46 = arith.constant dense<0.000000e+00> : vector<5xf32>
    %99 = vector.multi_reduction <add>, %98, %cst_46 [1] : vector<5x5xf32> to vector<5xf32>
    %100 = vector.shape_cast %99 : vector<5xf32> to vector<5x1xf32>
    %101 = tpu.reciprocal %100 {approx = true} : vector<5x1xf32> -> vector<5x1xf32>
    %102 = vector.broadcast %101 : vector<5x1xf32> to vector<5x5xf32>
    %103 = arith.mulf %98, %102 : vector<5x5xf32>
    %104 = arith.truncf %103 : vector<5x5xf32> to vector<5x5xbf16>
    %cst_47 = arith.constant dense<0.000000e+00> : vector<5x16xf32>
    %105 = tpu.matmul %104, %92, %cst_47 {dimension_numbers = #tpu.dot_dimension_numbers<[1], [0], [0], [1], [0, 0, 1, 1], [], []>} : vector<5x5xbf16>, vector<5x16xbf16>, vector<5x16xf32> -> vector<5x16xf32>
    %106 = vector.extract_strided_slice %53 {offsets = [0, 48], sizes = [5, 16], strides = [1, 1]} : vector<10x64xbf16> to vector<5x16xbf16>
    %107 = vector.extract_strided_slice %55 {offsets = [0, 48], sizes = [5, 16], strides = [1, 1]} : vector<10x64xbf16> to vector<5x16xbf16>
    %108 = vector.extract_strided_slice %57 {offsets = [0, 48], sizes = [5, 16], strides = [1, 1]} : vector<10x64xbf16> to vector<5x16xbf16>
    %cst_48 = arith.constant dense<0.000000e+00> : vector<5x5xf32>
    %109 = tpu.matmul %106, %107, %cst_48 {dimension_numbers = #tpu.dot_dimension_numbers<[1], [1], [0], [0], [0, 0, 1, 0], [], []>} : vector<5x16xbf16>, vector<5x16xbf16>, vector<5x5xf32> -> vector<5x5xf32>
    %cst_49 = arith.constant dense<0xFF800000> : vector<5xf32>
    %110 = vector.multi_reduction <maximumf>, %109, %cst_49 [1] : vector<5x5xf32> to vector<5xf32>
    %111 = vector.shape_cast %110 : vector<5xf32> to vector<5x1xf32>
    %112 = vector.broadcast %111 : vector<5x1xf32> to vector<5x5xf32>
    %113 = arith.subf %109, %112 : vector<5x5xf32>
    %114 = math.exp %113 : vector<5x5xf32>
    %cst_50 = arith.constant dense<0.000000e+00> : vector<5xf32>
    %115 = vector.multi_reduction <add>, %114, %cst_50 [1] : vector<5x5xf32> to vector<5xf32>
    %116 = vector.shape_cast %115 : vector<5xf32> to vector<5x1xf32>
    %117 = tpu.reciprocal %116 {approx = true} : vector<5x1xf32> -> vector<5x1xf32>
    %118 = vector.broadcast %117 : vector<5x1xf32> to vector<5x5xf32>
    %119 = arith.mulf %114, %118 : vector<5x5xf32>
    %120 = arith.truncf %119 : vector<5x5xf32> to vector<5x5xbf16>
    %cst_51 = arith.constant dense<0.000000e+00> : vector<5x16xf32>
    %121 = tpu.matmul %120, %108, %cst_51 {dimension_numbers = #tpu.dot_dimension_numbers<[1], [0], [0], [1], [0, 0, 1, 1], [], []>} : vector<5x5xbf16>, vector<5x16xbf16>, vector<5x16xf32> -> vector<5x16xf32>
    %122 = tpu.concatenate %73, %89, %105, %121 in 1 : vector<5x16xf32>, vector<5x16xf32>, vector<5x16xf32>, vector<5x16xf32> -> vector<5x64xf32>
    %123 = vector.extract_strided_slice %53 {offsets = [5, 0], sizes = [5, 16], strides = [1, 1]} : vector<10x64xbf16> to vector<5x16xbf16>
    %124 = vector.extract_strided_slice %55 {offsets = [5, 0], sizes = [5, 16], strides = [1, 1]} : vector<10x64xbf16> to vector<5x16xbf16>
    %125 = vector.extract_strided_slice %57 {offsets = [5, 0], sizes = [5, 16], strides = [1, 1]} : vector<10x64xbf16> to vector<5x16xbf16>
    %cst_52 = arith.constant dense<0.000000e+00> : vector<5x5xf32>
    %126 = tpu.matmul %123, %124, %cst_52 {dimension_numbers = #tpu.dot_dimension_numbers<[1], [1], [0], [0], [0, 0, 1, 0], [], []>} : vector<5x16xbf16>, vector<5x16xbf16>, vector<5x5xf32> -> vector<5x5xf32>
    %cst_53 = arith.constant dense<0xFF800000> : vector<5xf32>
    %127 = vector.multi_reduction <maximumf>, %126, %cst_53 [1] : vector<5x5xf32> to vector<5xf32>
    %128 = vector.shape_cast %127 : vector<5xf32> to vector<5x1xf32>
    %129 = vector.broadcast %128 : vector<5x1xf32> to vector<5x5xf32>
    %130 = arith.subf %126, %129 : vector<5x5xf32>
    %131 = math.exp %130 : vector<5x5xf32>
    %cst_54 = arith.constant dense<0.000000e+00> : vector<5xf32>
    %132 = vector.multi_reduction <add>, %131, %cst_54 [1] : vector<5x5xf32> to vector<5xf32>
    %133 = vector.shape_cast %132 : vector<5xf32> to vector<5x1xf32>
    %134 = tpu.reciprocal %133 {approx = true} : vector<5x1xf32> -> vector<5x1xf32>
    %135 = vector.broadcast %134 : vector<5x1xf32> to vector<5x5xf32>
    %136 = arith.mulf %131, %135 : vector<5x5xf32>
    %137 = arith.truncf %136 : vector<5x5xf32> to vector<5x5xbf16>
    %cst_55 = arith.constant dense<0.000000e+00> : vector<5x16xf32>
    %138 = tpu.matmul %137, %125, %cst_55 {dimension_numbers = #tpu.dot_dimension_numbers<[1], [0], [0], [1], [0, 0, 1, 1], [], []>} : vector<5x5xbf16>, vector<5x16xbf16>, vector<5x16xf32> -> vector<5x16xf32>
    %139 = vector.extract_strided_slice %53 {offsets = [5, 16], sizes = [5, 16], strides = [1, 1]} : vector<10x64xbf16> to vector<5x16xbf16>
    %140 = vector.extract_strided_slice %55 {offsets = [5, 16], sizes = [5, 16], strides = [1, 1]} : vector<10x64xbf16> to vector<5x16xbf16>
    %141 = vector.extract_strided_slice %57 {offsets = [5, 16], sizes = [5, 16], strides = [1, 1]} : vector<10x64xbf16> to vector<5x16xbf16>
    %cst_56 = arith.constant dense<0.000000e+00> : vector<5x5xf32>
    %142 = tpu.matmul %139, %140, %cst_56 {dimension_numbers = #tpu.dot_dimension_numbers<[1], [1], [0], [0], [0, 0, 1, 0], [], []>} : vector<5x16xbf16>, vector<5x16xbf16>, vector<5x5xf32> -> vector<5x5xf32>
    %cst_57 = arith.constant dense<0xFF800000> : vector<5xf32>
    %143 = vector.multi_reduction <maximumf>, %142, %cst_57 [1] : vector<5x5xf32> to vector<5xf32>
    %144 = vector.shape_cast %143 : vector<5xf32> to vector<5x1xf32>
    %145 = vector.broadcast %144 : vector<5x1xf32> to vector<5x5xf32>
    %146 = arith.subf %142, %145 : vector<5x5xf32>
    %147 = math.exp %146 : vector<5x5xf32>
    %cst_58 = arith.constant dense<0.000000e+00> : vector<5xf32>
    %148 = vector.multi_reduction <add>, %147, %cst_58 [1] : vector<5x5xf32> to vector<5xf32>
    %149 = vector.shape_cast %148 : vector<5xf32> to vector<5x1xf32>
    %150 = tpu.reciprocal %149 {approx = true} : vector<5x1xf32> -> vector<5x1xf32>
    %151 = vector.broadcast %150 : vector<5x1xf32> to vector<5x5xf32>
    %152 = arith.mulf %147, %151 : vector<5x5xf32>
    %153 = arith.truncf %152 : vector<5x5xf32> to vector<5x5xbf16>
    %cst_59 = arith.constant dense<0.000000e+00> : vector<5x16xf32>
    %154 = tpu.matmul %153, %141, %cst_59 {dimension_numbers = #tpu.dot_dimension_numbers<[1], [0], [0], [1], [0, 0, 1, 1], [], []>} : vector<5x5xbf16>, vector<5x16xbf16>, vector<5x16xf32> -> vector<5x16xf32>
    %155 = vector.extract_strided_slice %53 {offsets = [5, 32], sizes = [5, 16], strides = [1, 1]} : vector<10x64xbf16> to vector<5x16xbf16>
    %156 = vector.extract_strided_slice %55 {offsets = [5, 32], sizes = [5, 16], strides = [1, 1]} : vector<10x64xbf16> to vector<5x16xbf16>
    %157 = vector.extract_strided_slice %57 {offsets = [5, 32], sizes = [5, 16], strides = [1, 1]} : vector<10x64xbf16> to vector<5x16xbf16>
    %cst_60 = arith.constant dense<0.000000e+00> : vector<5x5xf32>
    %158 = tpu.matmul %155, %156, %cst_60 {dimension_numbers = #tpu.dot_dimension_numbers<[1], [1], [0], [0], [0, 0, 1, 0], [], []>} : vector<5x16xbf16>, vector<5x16xbf16>, vector<5x5xf32> -> vector<5x5xf32>
    %cst_61 = arith.constant dense<0xFF800000> : vector<5xf32>
    %159 = vector.multi_reduction <maximumf>, %158, %cst_61 [1] : vector<5x5xf32> to vector<5xf32>
    %160 = vector.shape_cast %159 : vector<5xf32> to vector<5x1xf32>
    %161 = vector.broadcast %160 : vector<5x1xf32> to vector<5x5xf32>
    %162 = arith.subf %158, %161 : vector<5x5xf32>
    %163 = math.exp %162 : vector<5x5xf32>
    %cst_62 = arith.constant dense<0.000000e+00> : vector<5xf32>
    %164 = vector.multi_reduction <add>, %163, %cst_62 [1] : vector<5x5xf32> to vector<5xf32>
    %165 = vector.shape_cast %164 : vector<5xf32> to vector<5x1xf32>
    %166 = tpu.reciprocal %165 {approx = true} : vector<5x1xf32> -> vector<5x1xf32>
    %167 = vector.broadcast %166 : vector<5x1xf32> to vector<5x5xf32>
    %168 = arith.mulf %163, %167 : vector<5x5xf32>
    %169 = arith.truncf %168 : vector<5x5xf32> to vector<5x5xbf16>
    %cst_63 = arith.constant dense<0.000000e+00> : vector<5x16xf32>
    %170 = tpu.matmul %169, %157, %cst_63 {dimension_numbers = #tpu.dot_dimension_numbers<[1], [0], [0], [1], [0, 0, 1, 1], [], []>} : vector<5x5xbf16>, vector<5x16xbf16>, vector<5x16xf32> -> vector<5x16xf32>
    %171 = vector.extract_strided_slice %53 {offsets = [5, 48], sizes = [5, 16], strides = [1, 1]} : vector<10x64xbf16> to vector<5x16xbf16>
    %172 = vector.extract_strided_slice %55 {offsets = [5, 48], sizes = [5, 16], strides = [1, 1]} : vector<10x64xbf16> to vector<5x16xbf16>
    %173 = vector.extract_strided_slice %57 {offsets = [5, 48], sizes = [5, 16], strides = [1, 1]} : vector<10x64xbf16> to vector<5x16xbf16>
    %cst_64 = arith.constant dense<0.000000e+00> : vector<5x5xf32>
    %174 = tpu.matmul %171, %172, %cst_64 {dimension_numbers = #tpu.dot_dimension_numbers<[1], [1], [0], [0], [0, 0, 1, 0], [], []>} : vector<5x16xbf16>, vector<5x16xbf16>, vector<5x5xf32> -> vector<5x5xf32>
    %cst_65 = arith.constant dense<0xFF800000> : vector<5xf32>
    %175 = vector.multi_reduction <maximumf>, %174, %cst_65 [1] : vector<5x5xf32> to vector<5xf32>
    %176 = vector.shape_cast %175 : vector<5xf32> to vector<5x1xf32>
    %177 = vector.broadcast %176 : vector<5x1xf32> to vector<5x5xf32>
    %178 = arith.subf %174, %177 : vector<5x5xf32>
    %179 = math.exp %178 : vector<5x5xf32>
    %cst_66 = arith.constant dense<0.000000e+00> : vector<5xf32>
    %180 = vector.multi_reduction <add>, %179, %cst_66 [1] : vector<5x5xf32> to vector<5xf32>
    %181 = vector.shape_cast %180 : vector<5xf32> to vector<5x1xf32>
    %182 = tpu.reciprocal %181 {approx = true} : vector<5x1xf32> -> vector<5x1xf32>
    %183 = vector.broadcast %182 : vector<5x1xf32> to vector<5x5xf32>
    %184 = arith.mulf %179, %183 : vector<5x5xf32>
    %185 = arith.truncf %184 : vector<5x5xf32> to vector<5x5xbf16>
    %cst_67 = arith.constant dense<0.000000e+00> : vector<5x16xf32>
    %186 = tpu.matmul %185, %173, %cst_67 {dimension_numbers = #tpu.dot_dimension_numbers<[1], [0], [0], [1], [0, 0, 1, 1], [], []>} : vector<5x5xbf16>, vector<5x16xbf16>, vector<5x16xf32> -> vector<5x16xf32>
    %187 = tpu.concatenate %138, %154, %170, %186 in 1 : vector<5x16xf32>, vector<5x16xf32>, vector<5x16xf32>, vector<5x16xf32> -> vector<5x64xf32>
    %188 = tpu.concatenate %122, %187 in 0 : vector<5x64xf32>, vector<5x64xf32> -> vector<10x64xf32>
    %189 = arith.truncf %188 : vector<10x64xf32> to vector<10x64xbf16>
    %c0_68 = arith.constant 0 : index
    %c0_69 = arith.constant 0 : index
    %190 = vector.load %arg10[%c0_68, %c0_69] : memref<64x64xbf16, #tpu.memory_space<vmem>>, vector<64x64xbf16>
    %cst_70 = arith.constant dense<0.000000e+00> : vector<10x64xf32>
    %191 = tpu.matmul %189, %190, %cst_70 {dimension_numbers = #tpu.dot_dimension_numbers<[1], [0], [0], [1], [0, 0, 1, 1], [], []>} : vector<10x64xbf16>, vector<64x64xbf16>, vector<10x64xf32> -> vector<10x64xf32>
    %192 = arith.addf %19, %191 : vector<10x64xf32>
    %c0_71 = arith.constant 0 : index
    %c0_72 = arith.constant 0 : index
    %193 = vector.load %arg11[%c0_71, %c0_72] : memref<1x64xf32, #tpu.memory_space<vmem>>, vector<1x64xf32>
    %194 = vector.broadcast %193 : vector<1x64xf32> to vector<10x64xf32>
    %195 = arith.addf %192, %194 : vector<10x64xf32>
    %cst_73 = arith.constant dense<0.000000e+00> : vector<10xf32>
    %196 = vector.multi_reduction <add>, %195, %cst_73 [1] : vector<10x64xf32> to vector<10xf32>
    %197 = vector.shape_cast %196 : vector<10xf32> to vector<10x1xf32>
    %cst_74 = arith.constant 6.400000e+01 : f32
    %198 = vector.broadcast %cst_74 : f32 to vector<10x1xf32>
    %199 = arith.divf %197, %198 : vector<10x1xf32>
    %200 = vector.broadcast %199 : vector<10x1xf32> to vector<10x64xf32>
    %201 = arith.subf %195, %200 : vector<10x64xf32>
    %202 = arith.mulf %201, %201 : vector<10x64xf32>
    %cst_75 = arith.constant dense<0.000000e+00> : vector<10xf32>
    %203 = vector.multi_reduction <add>, %202, %cst_75 [1] : vector<10x64xf32> to vector<10xf32>
    %204 = vector.shape_cast %203 : vector<10xf32> to vector<10x1xf32>
    %cst_76 = arith.constant 6.400000e+01 : f32
    %205 = vector.broadcast %cst_76 : f32 to vector<10x1xf32>
    %206 = arith.divf %204, %205 : vector<10x1xf32>
    %207 = vector.broadcast %199 : vector<10x1xf32> to vector<10x64xf32>
    %208 = arith.subf %195, %207 : vector<10x64xf32>
    %cst_77 = arith.constant 9.99999997E-7 : f32
    %209 = vector.broadcast %cst_77 : f32 to vector<10x1xf32>
    %210 = arith.addf %206, %209 : vector<10x1xf32>
    %211 = math.rsqrt %210 : vector<10x1xf32>
    %212 = vector.broadcast %211 : vector<10x1xf32> to vector<10x64xf32>
    %213 = arith.mulf %208, %212 : vector<10x64xf32>
    %c0_78 = arith.constant 0 : index
    %c0_79 = arith.constant 0 : index
    %214 = vector.load %arg12[%c0_78, %c0_79] : memref<1x64xf32, #tpu.memory_space<vmem>>, vector<1x64xf32>
    %215 = vector.broadcast %214 : vector<1x64xf32> to vector<10x64xf32>
    %216 = arith.mulf %213, %215 : vector<10x64xf32>
    %c0_80 = arith.constant 0 : index
    %c0_81 = arith.constant 0 : index
    %217 = vector.load %arg13[%c0_80, %c0_81] : memref<1x64xf32, #tpu.memory_space<vmem>>, vector<1x64xf32>
    %218 = vector.broadcast %217 : vector<1x64xf32> to vector<10x64xf32>
    %219 = arith.addf %216, %218 : vector<10x64xf32>
    %220 = arith.truncf %219 : vector<10x64xf32> to vector<10x64xbf16>
    %c0_82 = arith.constant 0 : index
    %c0_83 = arith.constant 0 : index
    %221 = vector.load %arg14[%c0_82, %c0_83] : memref<64x256xbf16, #tpu.memory_space<vmem>>, vector<64x256xbf16>
    %cst_84 = arith.constant dense<0.000000e+00> : vector<10x256xf32>
    %222 = tpu.matmul %220, %221, %cst_84 {dimension_numbers = #tpu.dot_dimension_numbers<[1], [0], [0], [1], [0, 0, 1, 1], [], []>} : vector<10x64xbf16>, vector<64x256xbf16>, vector<10x256xf32> -> vector<10x256xf32>
    %c0_85 = arith.constant 0 : index
    %c0_86 = arith.constant 0 : index
    %223 = vector.load %arg15[%c0_85, %c0_86] : memref<1x256xf32, #tpu.memory_space<vmem>>, vector<1x256xf32>
    %224 = vector.broadcast %223 : vector<1x256xf32> to vector<10x256xf32>
    %225 = arith.addf %222, %224 : vector<10x256xf32>
    %cst_87 = arith.constant 5.000000e-01 : f32
    %226 = vector.broadcast %cst_87 : f32 to vector<10x256xf32>
    %227 = arith.mulf %226, %225 : vector<10x256xf32>
    %cst_88 = arith.constant 4.471500e-02 : f32
    %228 = vector.broadcast %cst_88 : f32 to vector<10x256xf32>
    %229 = arith.mulf %228, %225 : vector<10x256xf32>
    %230 = arith.mulf %229, %225 : vector<10x256xf32>
    %231 = arith.mulf %230, %225 : vector<10x256xf32>
    %232 = arith.addf %225, %231 : vector<10x256xf32>
    %cst_89 = arith.constant 0.797884583 : f32
    %233 = vector.broadcast %cst_89 : f32 to vector<10x256xf32>
    %234 = arith.mulf %233, %232 : vector<10x256xf32>
    %235 = math.tanh %234 : vector<10x256xf32>
    %cst_90 = arith.constant 1.000000e+00 : f32
    %236 = vector.broadcast %cst_90 : f32 to vector<10x256xf32>
    %237 = arith.addf %236, %235 : vector<10x256xf32>
    %238 = arith.mulf %227, %237 : vector<10x256xf32>
    %239 = arith.truncf %238 : vector<10x256xf32> to vector<10x256xbf16>
    %c0_91 = arith.constant 0 : index
    %c0_92 = arith.constant 0 : index
    %240 = vector.load %arg16[%c0_91, %c0_92] : memref<256x64xbf16, #tpu.memory_space<vmem>>, vector<256x64xbf16>
    %cst_93 = arith.constant dense<0.000000e+00> : vector<10x64xf32>
    %241 = tpu.matmul %239, %240, %cst_93 {dimension_numbers = #tpu.dot_dimension_numbers<[1], [0], [0], [1], [0, 0, 1, 1], [], []>} : vector<10x256xbf16>, vector<256x64xbf16>, vector<10x64xf32> -> vector<10x64xf32>
    %242 = arith.addf %195, %241 : vector<10x64xf32>
    %c0_94 = arith.constant 0 : index
    %c0_95 = arith.constant 0 : index
    %243 = vector.load %arg17[%c0_94, %c0_95] : memref<1x64xf32, #tpu.memory_space<vmem>>, vector<1x64xf32>
    %244 = vector.broadcast %243 : vector<1x64xf32> to vector<10x64xf32>
    %245 = arith.addf %242, %244 : vector<10x64xf32>
    %cst_96 = arith.constant dense<0.000000e+00> : vector<10xf32>
    %246 = vector.multi_reduction <add>, %245, %cst_96 [1] : vector<10x64xf32> to vector<10xf32>
    %247 = vector.shape_cast %246 : vector<10xf32> to vector<10x1xf32>
    %cst_97 = arith.constant 6.400000e+01 : f32
    %248 = vector.broadcast %cst_97 : f32 to vector<10x1xf32>
    %249 = arith.divf %247, %248 : vector<10x1xf32>
    %250 = vector.broadcast %249 : vector<10x1xf32> to vector<10x64xf32>
    %251 = arith.subf %245, %250 : vector<10x64xf32>
    %252 = arith.mulf %251, %251 : vector<10x64xf32>
    %cst_98 = arith.constant dense<0.000000e+00> : vector<10xf32>
    %253 = vector.multi_reduction <add>, %252, %cst_98 [1] : vector<10x64xf32> to vector<10xf32>
    %254 = vector.shape_cast %253 : vector<10xf32> to vector<10x1xf32>
    %cst_99 = arith.constant 6.400000e+01 : f32
    %255 = vector.broadcast %cst_99 : f32 to vector<10x1xf32>
    %256 = arith.divf %254, %255 : vector<10x1xf32>
    %257 = vector.broadcast %249 : vector<10x1xf32> to vector<10x64xf32>
    %258 = arith.subf %245, %257 : vector<10x64xf32>
    %cst_100 = arith.constant 9.99999997E-7 : f32
    %259 = vector.broadcast %cst_100 : f32 to vector<10x1xf32>
    %260 = arith.addf %256, %259 : vector<10x1xf32>
    %261 = math.rsqrt %260 : vector<10x1xf32>
    %262 = vector.broadcast %261 : vector<10x1xf32> to vector<10x64xf32>
    %263 = arith.mulf %258, %262 : vector<10x64xf32>
    %c0_101 = arith.constant 0 : index
    %c0_102 = arith.constant 0 : index
    %264 = vector.load %arg18[%c0_101, %c0_102] : memref<1x64xf32, #tpu.memory_space<vmem>>, vector<1x64xf32>
    %265 = vector.broadcast %264 : vector<1x64xf32> to vector<10x64xf32>
    %266 = arith.mulf %263, %265 : vector<10x64xf32>
    %c0_103 = arith.constant 0 : index
    %c0_104 = arith.constant 0 : index
    %267 = vector.load %arg19[%c0_103, %c0_104] : memref<1x64xf32, #tpu.memory_space<vmem>>, vector<1x64xf32>
    %268 = vector.broadcast %267 : vector<1x64xf32> to vector<10x64xf32>
    %269 = arith.addf %266, %268 : vector<10x64xf32>
    %270 = arith.truncf %269 : vector<10x64xf32> to vector<10x64xbf16>
    %c0_105 = arith.constant 0 : index
    %c0_106 = arith.constant 0 : index
    %c0_107 = arith.constant 0 : index
    %271 = vector.load %arg20[%c0_105, %c0_106, %c0_107] : memref<1x10x64xbf16, #tpu.memory_space<vmem>>, vector<1x10x64xbf16>
    %272 = vector.shape_cast %271 : vector<1x10x64xbf16> to vector<10x64xbf16>
    %273 = vector.shape_cast %270 : vector<10x64xbf16> to vector<1x10x64xbf16>
    tpu.vector_store %arg20[%c0_105, %c0_106, %c0_107], %273 {strides = array<i32>} : memref<1x10x64xbf16, #tpu.memory_space<vmem>>, vector<1x10x64xbf16>,
    return
  }
  func.func @transform_0(%arg0: i32) -> (i32, i32, i32) {
    %c0_i32 = arith.constant 0 : i32
    %c0_i32_0 = arith.constant 0 : i32
    %c0_i32_1 = arith.constant 0 : i32
    return %arg0, %c0_i32, %c0_i32_0 : i32, i32, i32
  }
  func.func @transform_1(%arg0: i32) -> (i32, i32) {
    %c0_i32 = arith.constant 0 : i32
    %c0_i32_0 = arith.constant 0 : i32
    %c0_i32_1 = arith.constant 0 : i32
    return %c0_i32, %c0_i32_0 : i32, i32
  }
  func.func @transform_2(%arg0: i32) -> (i32, i32) {
    %c0_i32 = arith.constant 0 : i32
    %c0_i32_0 = arith.constant 0 : i32
    %c0_i32_1 = arith.constant 0 : i32
    return %c0_i32, %c0_i32_0 : i32, i32
  }
  func.func @transform_3(%arg0: i32) -> (i32, i32) {
    %c0_i32 = arith.constant 0 : i32
    %c0_i32_0 = arith.constant 0 : i32
    %c0_i32_1 = arith.constant 0 : i32
    return %c0_i32, %c0_i32_0 : i32, i32
  }
  func.func @transform_4(%arg0: i32) -> (i32, i32) {
    %c0_i32 = arith.constant 0 : i32
    %c0_i32_0 = arith.constant 0 : i32
    %c0_i32_1 = arith.constant 0 : i32
    return %c0_i32, %c0_i32_0 : i32, i32
  }
  func.func @transform_5(%arg0: i32) -> (i32, i32) {
    %c0_i32 = arith.constant 0 : i32
    %c0_i32_0 = arith.constant 0 : i32
    %c0_i32_1 = arith.constant 0 : i32
    return %c0_i32, %c0_i32_0 : i32, i32
  }
  func.func @transform_6(%arg0: i32) -> (i32, i32) {
    %c0_i32 = arith.constant 0 : i32
    %c0_i32_0 = arith.constant 0 : i32
    %c0_i32_1 = arith.constant 0 : i32
    return %c0_i32, %c0_i32_0 : i32, i32
  }
  func.func @transform_7(%arg0: i32) -> (i32, i32) {
    %c0_i32 = arith.constant 0 : i32
    %c0_i32_0 = arith.constant 0 : i32
    %c0_i32_1 = arith.constant 0 : i32
    return %c0_i32, %c0_i32_0 : i32, i32
  }
  func.func @transform_8(%arg0: i32) -> (i32, i32) {
    %c0_i32 = arith.constant 0 : i32
    %c0_i32_0 = arith.constant 0 : i32
    %c0_i32_1 = arith.constant 0 : i32
    return %c0_i32, %c0_i32_0 : i32, i32
  }
  func.func @transform_9(%arg0: i32) -> (i32, i32) {
    %c0_i32 = arith.constant 0 : i32
    %c0_i32_0 = arith.constant 0 : i32
    %c0_i32_1 = arith.constant 0 : i32
    return %c0_i32, %c0_i32_0 : i32, i32
  }
  func.func @transform_10(%arg0: i32) -> (i32, i32) {
    %c0_i32 = arith.constant 0 : i32
    %c0_i32_0 = arith.constant 0 : i32
    %c0_i32_1 = arith.constant 0 : i32
    return %c0_i32, %c0_i32_0 : i32, i32
  }
  func.func @transform_11(%arg0: i32) -> (i32, i32) {
    %c0_i32 = arith.constant 0 : i32
    %c0_i32_0 = arith.constant 0 : i32
    %c0_i32_1 = arith.constant 0 : i32
    return %c0_i32, %c0_i32_0 : i32, i32
  }
  func.func @transform_12(%arg0: i32) -> (i32, i32) {
    %c0_i32 = arith.constant 0 : i32
    %c0_i32_0 = arith.constant 0 : i32
    %c0_i32_1 = arith.constant 0 : i32
    return %c0_i32, %c0_i32_0 : i32, i32
  }
  func.func @transform_13(%arg0: i32) -> (i32, i32) {
    %c0_i32 = arith.constant 0 : i32
    %c0_i32_0 = arith.constant 0 : i32
    %c0_i32_1 = arith.constant 0 : i32
    return %c0_i32, %c0_i32_0 : i32, i32
  }
  func.func @transform_14(%arg0: i32) -> (i32, i32) {
    %c0_i32 = arith.constant 0 : i32
    %c0_i32_0 = arith.constant 0 : i32
    %c0_i32_1 = arith.constant 0 : i32
    return %c0_i32, %c0_i32_0 : i32, i32
  }
  func.func @transform_15(%arg0: i32) -> (i32, i32) {
    %c0_i32 = arith.constant 0 : i32
    %c0_i32_0 = arith.constant 0 : i32
    %c0_i32_1 = arith.constant 0 : i32
    return %c0_i32, %c0_i32_0 : i32, i32
  }
  func.func @transform_16(%arg0: i32) -> (i32, i32) {
    %c0_i32 = arith.constant 0 : i32
    %c0_i32_0 = arith.constant 0 : i32
    %c0_i32_1 = arith.constant 0 : i32
    return %c0_i32, %c0_i32_0 : i32, i32
  }
  func.func @transform_17(%arg0: i32) -> (i32, i32) {
    %c0_i32 = arith.constant 0 : i32
    %c0_i32_0 = arith.constant 0 : i32
    %c0_i32_1 = arith.constant 0 : i32
    return %c0_i32, %c0_i32_0 : i32, i32
  }
  func.func @transform_18(%arg0: i32) -> (i32, i32) {
    %c0_i32 = arith.constant 0 : i32
    %c0_i32_0 = arith.constant 0 : i32
    %c0_i32_1 = arith.constant 0 : i32
    return %c0_i32, %c0_i32_0 : i32, i32
  }
  func.func @transform_19(%arg0: i32) -> (i32, i32, i32) {
    %c0_i32 = arith.constant 0 : i32
    %c0_i32_0 = arith.constant 0 : i32
    %c0_i32_1 = arith.constant 0 : i32
    return %arg0, %c0_i32, %c0_i32_0 : i32, i32, i32
  }
}

</mosaic_0001>

<llo_original>
// kernel: tpu_custom_call.1
$region0: #{tpu_custom_call.1}
  #allocation0 [shape = 'u32[]', space=smem, size = 0x4, offset = 0x4, fixed_abs, tag = 'smem constant byte address 0x4 - core index']
  #allocation1 [shape = 'u32[72,128]{1,0:T(1,128)}', space=vmem, size = 0x9000, scoped, tag = 'internal scratch']
  #allocation2 [shape = 'f32[10,64]{1,0:T(8,128)}', space=vmem, size = 0x2000, scoped, tag = 'scratch operand']
  %s0 = inlined_call_operand.vmem [shape: bf16[4,8,192], index: 0, kind: input, shape index: {}]
  %s1 = inlined_call_operand.vmem [shape: bf16[192,64], index: 1, kind: input, shape index: {}]
  %s2 = inlined_call_operand.vmem [shape: f32[1,64], index: 2, kind: input, shape index: {}]
  %s3 = inlined_call_operand.vmem [shape: f32[1,64], index: 3, kind: input, shape index: {}]
  %s4 = inlined_call_operand.vmem [shape: f32[4,64], index: 4, kind: input, shape index: {}]
  %s5 = inlined_call_operand.vmem [shape: f32[1,64], index: 5, kind: input, shape index: {}]
  %s6 = inlined_call_operand.vmem [shape: f32[1,64], index: 6, kind: input, shape index: {}]
  %s7 = inlined_call_operand.vmem [shape: bf16[64,192], index: 7, kind: input, shape index: {}]
  %s8 = inlined_call_operand.vmem [shape: f32[1,192], index: 8, kind: input, shape index: {}]
  %s9 = inlined_call_operand.vmem [shape: bf16[64,64], index: 9, kind: input, shape index: {}]
  %s10 = inlined_call_operand.vmem [shape: f32[1,64], index: 10, kind: input, shape index: {}]
  %s11 = inlined_call_operand.vmem [shape: f32[1,64], index: 11, kind: input, shape index: {}]
  %s12 = inlined_call_operand.vmem [shape: f32[1,64], index: 12, kind: input, shape index: {}]
  %s13 = inlined_call_operand.vmem [shape: bf16[64,256], index: 13, kind: input, shape index: {}]
  %s14 = inlined_call_operand.vmem [shape: f32[1,256], index: 14, kind: input, shape index: {}]
  %s15 = inlined_call_operand.vmem [shape: bf16[256,64], index: 15, kind: input, shape index: {}]
  %s16 = inlined_call_operand.vmem [shape: f32[1,64], index: 16, kind: input, shape index: {}]
  %s17 = inlined_call_operand.vmem [shape: f32[1,64], index: 17, kind: input, shape index: {}]
  %s18 = inlined_call_operand.vmem [shape: f32[1,64], index: 18, kind: input, shape index: {}]
  %s19 = inlined_call_operand.vmem [shape: bf16[4,10,64], index: 19, kind: output, shape index: {}]
  %s20 = sld [smem:[#allocation0]]
  $region109: #{tpu_custom_call.1} parent=0
    _
  %s22 = ssub.s32 1, %s20
  %s23 = scalar_select 0, %s22, %s20
  loop: start=0, step=1, limit=6
  $region2: #{tpu_custom_call.1} parent=0 // loop_pre_header
    _
  $region3: #{tpu_custom_call.1} parent=0 // loop_header
    %s25 = sphi 0, %s29
    %p26 = scmp.ge.s32.totalorder %s25, 6
    %s35 = sphi 0, %s37
    %s38 = sphi 0, %s35
    %s39 = sphi 0, %s38
    %s55 = sphi 0, %s39
    %s59 = sphi 0, %s59
    %s61 = sphi 0, %s59
    %s62 = sphi 0, %s61
    %s76 = sphi 0, %s62
    %s80 = sphi 0, %s80
    %s82 = sphi 0, %s80
    %s83 = sphi 0, %s82
    %s97 = sphi 0, %s83
    %s101 = sphi 0, %s101
    %s103 = sphi 0, %s101
    %s104 = sphi 0, %s103
    %s118 = sphi 0, %s104
    %s122 = sphi 0, %s122
    %s124 = sphi 0, %s122
    %s125 = sphi 0, %s124
    %s139 = sphi 0, %s125
    %s143 = sphi 0, %s143
    %s145 = sphi 0, %s143
    %s146 = sphi 0, %s145
    %s160 = sphi 0, %s146
    %s164 = sphi 0, %s164
    %s166 = sphi 0, %s164
    %s167 = sphi 0, %s166
    %s181 = sphi 0, %s167
    %s185 = sphi 0, %s185
    %s187 = sphi 0, %s185
    %s188 = sphi 0, %s187
    %s202 = sphi 0, %s188
    %s206 = sphi 0, %s206
    %s208 = sphi 0, %s206
    %s209 = sphi 0, %s208
    %s223 = sphi 0, %s209
    %s227 = sphi 0, %s227
    %s229 = sphi 0, %s227
    %s230 = sphi 0, %s229
    %s244 = sphi 0, %s230
    %s248 = sphi 0, %s248
    %s250 = sphi 0, %s248
    %s251 = sphi 0, %s250
    %s265 = sphi 0, %s251
    %s269 = sphi 0, %s269
    %s271 = sphi 0, %s269
    %s272 = sphi 0, %s271
    %s286 = sphi 0, %s272
    %s290 = sphi 0, %s290
    %s292 = sphi 0, %s290
    %s293 = sphi 0, %s292
    %s307 = sphi 0, %s293
    %s311 = sphi 0, %s311
    %s313 = sphi 0, %s311
    %s314 = sphi 0, %s313
    %s328 = sphi 0, %s314
    %s332 = sphi 0, %s332
    %s334 = sphi 0, %s332
    %s335 = sphi 0, %s334
    %s349 = sphi 0, %s335
    %s353 = sphi 0, %s353
    %s355 = sphi 0, %s353
    %s356 = sphi 0, %s355
    %s370 = sphi 0, %s356
    %s374 = sphi 0, %s374
    %s376 = sphi 0, %s374
    %s377 = sphi 0, %s376
    %s391 = sphi 0, %s377
    %s395 = sphi 0, %s395
    %s397 = sphi 0, %s395
    %s398 = sphi 0, %s397
    %s412 = sphi 0, %s398
    %s416 = sphi 0, %s416
    %s418 = sphi 0, %s416
    %s419 = sphi 0, %s418
    %s433 = sphi 0, %s419
    %s439 = sphi 0, %s441
    %s442 = sphi 0, %s439
    %s443 = sphi 0, %s442
    %s459 = sphi 0, %s443
  $region4: #{tpu_custom_call.1} parent=0 // loop_header_branch
    %28 = sbr.rel (%p26) target = $region8
  $region5: #{tpu_custom_call.1} parent=0 // loop_body
    %s30 = ssub.s32 %s25, 1
    %s31 = ssub.s32 %s25, 2
    %s32 = sadd.s32 %s25, 1
    %s33 = ssub.s32 %s25, %s32
    %p34 = scmp.eq.s32.totalorder %s33, 0
    %s36 = sadd.s32 %s35, 1
    %s37 = scalar_select %p34, %s35, %s36
    %p40 = pneg %p34
    %p41 = scmp.eq.s32.totalorder %s25, 3
    %p42 = por %p40, %p41
    %p43 = scmp.ne.s32.totalorder %s35, %s38
    %p44 = scmp.eq.s32.totalorder %s25, 0
    %p45 = por %p43, %p44
    %p46 = scmp.ne.s32.totalorder %s35, %s38
    %p47 = scmp.eq.s32.totalorder %s30, 3
    %p48 = por %p46, %p47
    %p49 = scmp.ne.s32.totalorder %s38, %s39
    %p50 = scmp.eq.s32.totalorder %s30, 0
    %p51 = por %p49, %p50
    %p52 = scmp.ne.s32.totalorder %s38, %s39
    %p53 = scmp.eq.s32.totalorder %s31, 3
    %p54 = por %p52, %p53
    %p56 = scmp.ne.s32.totalorder %s39, %s55
    %p57 = scmp.eq.s32.totalorder %s31, 0
    %p58 = por %p56, %p57
    %s60 = sadd.s32 %s59, 1
    %p63 = scmp.eq.s32.totalorder %s25, 3
    %p64 = scmp.ne.s32.totalorder %s59, %s61
    %p65 = scmp.eq.s32.totalorder %s25, 0
    %p66 = por %p64, %p65
    %p67 = scmp.ne.s32.totalorder %s59, %s61
    %p68 = scmp.eq.s32.totalorder %s30, 3
    %p69 = por %p67, %p68
    %p70 = scmp.ne.s32.totalorder %s61, %s62
    %p71 = scmp.eq.s32.totalorder %s30, 0
    %p72 = por %p70, %p71
    %p73 = scmp.ne.s32.totalorder %s61, %s62
    %p74 = scmp.eq.s32.totalorder %s31, 3
    %p75 = por %p73, %p74
    %p77 = scmp.ne.s32.totalorder %s62, %s76
    %p78 = scmp.eq.s32.totalorder %s31, 0
    %p79 = por %p77, %p78
    %s81 = sadd.s32 %s80, 1
    %p84 = scmp.eq.s32.totalorder %s25, 3
    %p85 = scmp.ne.s32.totalorder %s80, %s82
    %p86 = scmp.eq.s32.totalorder %s25, 0
    %p87 = por %p85, %p86
    %p88 = scmp.ne.s32.totalorder %s80, %s82
    %p89 = scmp.eq.s32.totalorder %s30, 3
    %p90 = por %p88, %p89
    %p91 = scmp.ne.s32.totalorder %s82, %s83
    %p92 = scmp.eq.s32.totalorder %s30, 0
    %p93 = por %p91, %p92
    %p94 = scmp.ne.s32.totalorder %s82, %s83
    %p95 = scmp.eq.s32.totalorder %s31, 3
    %p96 = por %p94, %p95
    %p98 = scmp.ne.s32.totalorder %s83, %s97
    %p99 = scmp.eq.s32.totalorder %s31, 0
    %p100 = por %p98, %p99
    %s102 = sadd.s32 %s101, 1
    %p105 = scmp.eq.s32.totalorder %s25, 3
    %p106 = scmp.ne.s32.totalorder %s101, %s103
    %p107 = scmp.eq.s32.totalorder %s25, 0
    %p108 = por %p106, %p107
    %p109 = scmp.ne.s32.totalorder %s101, %s103
    %p110 = scmp.eq.s32.totalorder %s30, 3
    %p111 = por %p109, %p110
    %p112 = scmp.ne.s32.totalorder %s103, %s104
    %p113 = scmp.eq.s32.totalorder %s30, 0
    %p114 = por %p112, %p113
    %p115 = scmp.ne.s32.totalorder %s103, %s104
    %p116 = scmp.eq.s32.totalorder %s31, 3
    %p117 = por %p115, %p116
    %p119 = scmp.ne.s32.totalorder %s104, %s118
    %p120 = scmp.eq.s32.totalorder %s31, 0
    %p121 = por %p119, %p120
    %s123 = sadd.s32 %s122, 1
    %p126 = scmp.eq.s32.totalorder %s25, 3
    %p127 = scmp.ne.s32.totalorder %s122, %s124
    %p128 = scmp.eq.s32.totalorder %s25, 0
    %p129 = por %p127, %p128
    %p130 = scmp.ne.s32.totalorder %s122, %s124
    %p131 = scmp.eq.s32.totalorder %s30, 3
    %p132 = por %p130, %p131
    %p133 = scmp.ne.s32.totalorder %s124, %s125
    %p134 = scmp.eq.s32.totalorder %s30, 0
    %p135 = por %p133, %p134
    %p136 = scmp.ne.s32.totalorder %s124, %s125
    %p137 = scmp.eq.s32.totalorder %s31, 3
    %p138 = por %p136, %p137
    %p140 = scmp.ne.s32.totalorder %s125, %s139
    %p141 = scmp.eq.s32.totalorder %s31, 0
    %p142 = por %p140, %p141
    %s144 = sadd.s32 %s143, 1
    %p147 = scmp.eq.s32.totalorder %s25, 3
    %p148 = scmp.ne.s32.totalorder %s143, %s145
    %p149 = scmp.eq.s32.totalorder %s25, 0
    %p150 = por %p148, %p149
    %p151 = scmp.ne.s32.totalorder %s143, %s145
    %p152 = scmp.eq.s32.totalorder %s30, 3
    %p153 = por %p151, %p152
    %p154 = scmp.ne.s32.totalorder %s145, %s146
    %p155 = scmp.eq.s32.totalorder %s30, 0
    %p156 = por %p154, %p155
    %p157 = scmp.ne.s32.totalorder %s145, %s146
    %p158 = scmp.eq.s32.totalorder %s31, 3
    %p159 = por %p157, %p158
    %p161 = scmp.ne.s32.totalorder %s146, %s160
    %p162 = scmp.eq.s32.totalorder %s31, 0
    %p163 = por %p161, %p162
    %s165 = sadd.s32 %s164, 1
    %p168 = scmp.eq.s32.totalorder %s25, 3
    %p169 = scmp.ne.s32.totalorder %s164, %s166
    %p170 = scmp.eq.s32.totalorder %s25, 0
    %p171 = por %p169, %p170
    %p172 = scmp.ne.s32.totalorder %s164, %s166
    %p173 = scmp.eq.s32.totalorder %s30, 3
    %p174 = por %p172, %p173
    %p175 = scmp.ne.s32.totalorder %s166, %s167
    %p176 = scmp.eq.s32.totalorder %s30, 0
    %p177 = por %p175, %p176
    %p178 = scmp.ne.s32.totalorder %s166, %s167
    %p179 = scmp.eq.s32.totalorder %s31, 3
    %p180 = por %p178, %p179
    %p182 = scmp.ne.s32.totalorder %s167, %s181
    %p183 = scmp.eq.s32.totalorder %s31, 0
    %p184 = por %p182, %p183
    %s186 = sadd.s32 %s185, 1
    %p189 = scmp.eq.s32.totalorder %s25, 3
    %p190 = scmp.ne.s32.totalorder %s185, %s187
    %p191 = scmp.eq.s32.totalorder %s25, 0
    %p192 = por %p190, %p191
    %p193 = scmp.ne.s32.totalorder %s185, %s187
    %p194 = scmp.eq.s32.totalorder %s30, 3
    %p195 = por %p193, %p194
    %p196 = scmp.ne.s32.totalorder %s187, %s188
    %p197 = scmp.eq.s32.totalorder %s30, 0
    %p198 = por %p196, %p197
    %p199 = scmp.ne.s32.totalorder %s187, %s188
    %p200 = scmp.eq.s32.totalorder %s31, 3
    %p201 = por %p199, %p200
    %p203 = scmp.ne.s32.totalorder %s188, %s202
    %p204 = scmp.eq.s32.totalorder %s31, 0
    %p205 = por %p203, %p204
    %s207 = sadd.s32 %s206, 1
    %p210 = scmp.eq.s32.totalorder %s25, 3
    %p211 = scmp.ne.s32.totalorder %s206, %s208
    %p212 = scmp.eq.s32.totalorder %s25, 0
    %p213 = por %p211, %p212
    %p214 = scmp.ne.s32.totalorder %s206, %s208
    %p215 = scmp.eq.s32.totalorder %s30, 3
    %p216 = por %p214, %p215
    %p217 = scmp.ne.s32.totalorder %s208, %s209
    %p218 = scmp.eq.s32.totalorder %s30, 0
    %p219 = por %p217, %p218
    %p220 = scmp.ne.s32.totalorder %s208, %s209
    %p221 = scmp.eq.s32.totalorder %s31, 3
    %p222 = por %p220, %p221
    %p224 = scmp.ne.s32.totalorder %s209, %s223
    %p225 = scmp.eq.s32.totalorder %s31, 0
    %p226 = por %p224, %p225
    %s228 = sadd.s32 %s227, 1
    %p231 = scmp.eq.s32.totalorder %s25, 3
    %p232 = scmp.ne.s32.totalorder %s227, %s229
    %p233 = scmp.eq.s32.totalorder %s25, 0
    %p234 = por %p232, %p233
    %p235 = scmp.ne.s32.totalorder %s227, %s229
    %p236 = scmp.eq.s32.totalorder %s30, 3
    %p237 = por %p235, %p236
    %p238 = scmp.ne.s32.totalorder %s229, %s230
    %p239 = scmp.eq.s32.totalorder %s30, 0
    %p240 = por %p238, %p239
    %p241 = scmp.ne.s32.totalorder %s229, %s230
    %p242 = scmp.eq.s32.totalorder %s31, 3
    %p243 = por %p241, %p242
    %p245 = scmp.ne.s32.totalorder %s230, %s244
    %p246 = scmp.eq.s32.totalorder %s31, 0
    %p247 = por %p245, %p246
    %s249 = sadd.s32 %s248, 1
    %p252 = scmp.eq.s32.totalorder %s25, 3
    %p253 = scmp.ne.s32.totalorder %s248, %s250
    %p254 = scmp.eq.s32.totalorder %s25, 0
    %p255 = por %p253, %p254
    %p256 = scmp.ne.s32.totalorder %s248, %s250
    %p257 = scmp.eq.s32.totalorder %s30, 3
    %p258 = por %p256, %p257
    %p259 = scmp.ne.s32.totalorder %s250, %s251
    %p260 = scmp.eq.s32.totalorder %s30, 0
    %p261 = por %p259, %p260
    %p262 = scmp.ne.s32.totalorder %s250, %s251
    %p263 = scmp.eq.s32.totalorder %s31, 3
    %p264 = por %p262, %p263
    %p266 = scmp.ne.s32.totalorder %s251, %s265
    %p267 = scmp.eq.s32.totalorder %s31, 0
    %p268 = por %p266, %p267
    %s270 = sadd.s32 %s269, 1
    %p273 = scmp.eq.s32.totalorder %s25, 3
    %p274 = scmp.ne.s32.totalorder %s269, %s271
    %p275 = scmp.eq.s32.totalorder %s25, 0
    %p276 = por %p274, %p275
    %p277 = scmp.ne.s32.totalorder %s269, %s271
    %p278 = scmp.eq.s32.totalorder %s30, 3
    %p279 = por %p277, %p278
    %p280 = scmp.ne.s32.totalorder %s271, %s272
    %p281 = scmp.eq.s32.totalorder %s30, 0
    %p282 = por %p280, %p281
    %p283 = scmp.ne.s32.totalorder %s271, %s272
    %p284 = scmp.eq.s32.totalorder %s31, 3
    %p285 = por %p283, %p284
    %p287 = scmp.ne.s32.totalorder %s272, %s286
    %p288 = scmp.eq.s32.totalorder %s31, 0
    %p289 = por %p287, %p288
    %s291 = sadd.s32 %s290, 1
    %p294 = scmp.eq.s32.totalorder %s25, 3
    %p295 = scmp.ne.s32.totalorder %s290, %s292
    %p296 = scmp.eq.s32.totalorder %s25, 0
    %p297 = por %p295, %p296
    %p298 = scmp.ne.s32.totalorder %s290, %s292
    %p299 = scmp.eq.s32.totalorder %s30, 3
    %p300 = por %p298, %p299
    %p301 = scmp.ne.s32.totalorder %s292, %s293
    %p302 = scmp.eq.s32.totalorder %s30, 0
    %p303 = por %p301, %p302
    %p304 = scmp.ne.s32.totalorder %s292, %s293
    %p305 = scmp.eq.s32.totalorder %s31, 3
    %p306 = por %p304, %p305
    %p308 = scmp.ne.s32.totalorder %s293, %s307
    %p309 = scmp.eq.s32.totalorder %s31, 0
    %p310 = por %p308, %p309
    %s312 = sadd.s32 %s311, 1
    %p315 = scmp.eq.s32.totalorder %s25, 3
    %p316 = scmp.ne.s32.totalorder %s311, %s313
    %p317 = scmp.eq.s32.totalorder %s25, 0
    %p318 = por %p316, %p317
    %p319 = scmp.ne.s32.totalorder %s311, %s313
    %p320 = scmp.eq.s32.totalorder %s30, 3
    %p321 = por %p319, %p320
    %p322 = scmp.ne.s32.totalorder %s313, %s314
    %p323 = scmp.eq.s32.totalorder %s30, 0
    %p324 = por %p322, %p323
    %p325 = scmp.ne.s32.totalorder %s313, %s314
    %p326 = scmp.eq.s32.totalorder %s31, 3
    %p327 = por %p325, %p326
    %p329 = scmp.ne.s32.totalorder %s314, %s328
    %p330 = scmp.eq.s32.totalorder %s31, 0
    %p331 = por %p329, %p330
    %s333 = sadd.s32 %s332, 1
    %p336 = scmp.eq.s32.totalorder %s25, 3
    %p337 = scmp.ne.s32.totalorder %s332, %s334
    %p338 = scmp.eq.s32.totalorder %s25, 0
    %p339 = por %p337, %p338
    %p340 = scmp.ne.s32.totalorder %s332, %s334
    %p341 = scmp.eq.s32.totalorder %s30, 3
    %p342 = por %p340, %p341
    %p343 = scmp.ne.s32.totalorder %s334, %s335
    %p344 = scmp.eq.s32.totalorder %s30, 0
    %p345 = por %p343, %p344
    %p346 = scmp.ne.s32.totalorder %s334, %s335
    %p347 = scmp.eq.s32.totalorder %s31, 3
    %p348 = por %p346, %p347
    %p350 = scmp.ne.s32.totalorder %s335, %s349
    %p351 = scmp.eq.s32.totalorder %s31, 0
    %p352 = por %p350, %p351
    %s354 = sadd.s32 %s353, 1
    %p357 = scmp.eq.s32.totalorder %s25, 3
    %p358 = scmp.ne.s32.totalorder %s353, %s355
    %p359 = scmp.eq.s32.totalorder %s25, 0
    %p360 = por %p358, %p359
    %p361 = scmp.ne.s32.totalorder %s353, %s355
    %p362 = scmp.eq.s32.totalorder %s30, 3
    %p363 = por %p361, %p362
    %p364 = scmp.ne.s32.totalorder %s355, %s356
    %p365 = scmp.eq.s32.totalorder %s30, 0
    %p366 = por %p364, %p365
    %p367 = scmp.ne.s32.totalorder %s355, %s356
    %p368 = scmp.eq.s32.totalorder %s31, 3
    %p369 = por %p367, %p368
    %p371 = scmp.ne.s32.totalorder %s356, %s370
    %p372 = scmp.eq.s32.totalorder %s31, 0
    %p373 = por %p371, %p372
    %s375 = sadd.s32 %s374, 1
    %p378 = scmp.eq.s32.totalorder %s25, 3
    %p379 = scmp.ne.s32.totalorder %s374, %s376
    %p380 = scmp.eq.s32.totalorder %s25, 0
    %p381 = por %p379, %p380
    %p382 = scmp.ne.s32.totalorder %s374, %s376
    %p383 = scmp.eq.s32.totalorder %s30, 3
    %p384 = por %p382, %p383
    %p385 = scmp.ne.s32.totalorder %s376, %s377
    %p386 = scmp.eq.s32.totalorder %s30, 0
    %p387 = por %p385, %p386
    %p388 = scmp.ne.s32.totalorder %s376, %s377
    %p389 = scmp.eq.s32.totalorder %s31, 3
    %p390 = por %p388, %p389
    %p392 = scmp.ne.s32.totalorder %s377, %s391
    %p393 = scmp.eq.s32.totalorder %s31, 0
    %p394 = por %p392, %p393
    %s396 = sadd.s32 %s395, 1
    %p399 = scmp.eq.s32.totalorder %s25, 3
    %p400 = scmp.ne.s32.totalorder %s395, %s397
    %p401 = scmp.eq.s32.totalorder %s25, 0
    %p402 = por %p400, %p401
    %p403 = scmp.ne.s32.totalorder %s395, %s397
    %p404 = scmp.eq.s32.totalorder %s30, 3
    %p405 = por %p403, %p404
    %p406 = scmp.ne.s32.totalorder %s397, %s398
    %p407 = scmp.eq.s32.totalorder %s30, 0
    %p408 = por %p406, %p407
    %p409 = scmp.ne.s32.totalorder %s397, %s398
    %p410 = scmp.eq.s32.totalorder %s31, 3
    %p411 = por %p409, %p410
    %p413 = scmp.ne.s32.totalorder %s398, %s412
    %p414 = scmp.eq.s32.totalorder %s31, 0
    %p415 = por %p413, %p414
    %s417 = sadd.s32 %s416, 1
    %p420 = scmp.eq.s32.totalorder %s25, 3
    %p421 = scmp.ne.s32.totalorder %s416, %s418
    %p422 = scmp.eq.s32.totalorder %s25, 0
    %p423 = por %p421, %p422
    %p424 = scmp.ne.s32.totalorder %s416, %s418
    %p425 = scmp.eq.s32.totalorder %s30, 3
    %p426 = por %p424, %p425
    %p427 = scmp.ne.s32.totalorder %s418, %s419
    %p428 = scmp.eq.s32.totalorder %s30, 0
    %p429 = por %p427, %p428
    %p430 = scmp.ne.s32.totalorder %s418, %s419
    %p431 = scmp.eq.s32.totalorder %s31, 3
    %p432 = por %p430, %p431
    %p434 = scmp.ne.s32.totalorder %s419, %s433
    %p435 = scmp.eq.s32.totalorder %s31, 0
    %p436 = por %p434, %p435
    %s437 = ssub.s32 %s25, %s32
    %p438 = scmp.eq.s32.totalorder %s437, 0
    %s440 = sadd.s32 %s439, 1
    %s441 = scalar_select %p438, %s439, %s440
    %p444 = pneg %p438
    %p445 = scmp.eq.s32.totalorder %s25, 3
    %p446 = por %p444, %p445
    %p447 = scmp.ne.s32.totalorder %s439, %s442
    %p448 = scmp.eq.s32.totalorder %s25, 0
    %p449 = por %p447, %p448
    %p450 = scmp.ne.s32.totalorder %s439, %s442
    %p451 = scmp.eq.s32.totalorder %s30, 3
    %p452 = por %p450, %p451
    %p453 = scmp.ne.s32.totalorder %s442, %s443
    %p454 = scmp.eq.s32.totalorder %s30, 0
    %p455 = por %p453, %p454
    %p456 = scmp.ne.s32.totalorder %s442, %s443
    %p457 = scmp.eq.s32.totalorder %s31, 3
    %p458 = por %p456, %p457
    %p460 = scmp.ne.s32.totalorder %s443, %s459
    %p461 = scmp.eq.s32.totalorder %s31, 0
    %p462 = por %p460, %p461
    %p463 = scmp.le.s32.totalorder 1, %s25
    %p464 = scmp.lt.s32.totalorder %s25, 5
    %p465 = pnand %p463, %p464
    %p466 = pneg %p465
    // Predicated region
    $region9: #{tpu_custom_call.1} parent=5 // pred_check
      _
    $region10: #{tpu_custom_call.1} parent=5 // pred_check_branch
      %468 = sbr.rel (%p465) target = $region12
    $region11: #{tpu_custom_call.1} parent=5 // pred_region
      %s469 = ssub.s32 %s25, 1
      // Predicated region
      $region13: #{tpu_custom_call.1} parent=11 // pred_check
        %p470 = pneg %p72
      $region14: #{tpu_custom_call.1} parent=11 // pred_check_branch
        %472 = sbr.rel (%p470) target = $region16
      $region15: #{tpu_custom_call.1} parent=11 // pred_region
        _
      $region16: #{tpu_custom_call.1} parent=11 // pred_fallthru
        _
      // Predicated region
      $region17: #{tpu_custom_call.1} parent=11 // pred_check
        %p473 = pneg %p93
      $region18: #{tpu_custom_call.1} parent=11 // pred_check_branch
        %475 = sbr.rel (%p473) target = $region20
      $region19: #{tpu_custom_call.1} parent=11 // pred_region
        _
      $region20: #{tpu_custom_call.1} parent=11 // pred_fallthru
        _
      // Predicated region
      $region21: #{tpu_custom_call.1} parent=11 // pred_check
        %p476 = pneg %p114
      $region22: #{tpu_custom_call.1} parent=11 // pred_check_branch
        %478 = sbr.rel (%p476) target = $region24
      $region23: #{tpu_custom_call.1} parent=11 // pred_region
        _
      $region24: #{tpu_custom_call.1} parent=11 // pred_fallthru
        _
      // Predicated region
      $region25: #{tpu_custom_call.1} parent=11 // pred_check
        %p479 = pneg %p135
      $region26: #{tpu_custom_call.1} parent=11 // pred_check_branch
        %481 = sbr.rel (%p479) target = $region28
      $region27: #{tpu_custom_call.1} parent=11 // pred_region
        _
      $region28: #{tpu_custom_call.1} parent=11 // pred_fallthru
        _
      // Predicated region
      $region29: #{tpu_custom_call.1} parent=11 // pred_check
        %p482 = pneg %p156
      $region30: #{tpu_custom_call.1} parent=11 // pred_check_branch
        %484 = sbr.rel (%p482) target = $region32
      $region31: #{tpu_custom_call.1} parent=11 // pred_region
        _
      $region32: #{tpu_custom_call.1} parent=11 // pred_fallthru
        _
      // Predicated region
      $region33: #{tpu_custom_call.1} parent=11 // pred_check
        %p485 = pneg %p177
      $region34: #{tpu_custom_call.1} parent=11 // pred_check_branch
        %487 = sbr.rel (%p485) target = $region36
      $region35: #{tpu_custom_call.1} parent=11 // pred_region
        _
      $region36: #{tpu_custom_call.1} parent=11 // pred_fallthru
        _
      // Predicated region
      $region37: #{tpu_custom_call.1} parent=11 // pred_check
        %p488 = pneg %p198
      $region38: #{tpu_custom_call.1} parent=11 // pred_check_branch
        %490 = sbr.rel (%p488) target = $region40
      $region39: #{tpu_custom_call.1} parent=11 // pred_region
        _
      $region40: #{tpu_custom_call.1} parent=11 // pred_fallthru
        _
      // Predicated region
      $region41: #{tpu_custom_call.1} parent=11 // pred_check
        %p491 = pneg %p219
      $region42: #{tpu_custom_call.1} parent=11 // pred_check_branch
        %493 = sbr.rel (%p491) target = $region44
      $region43: #{tpu_custom_call.1} parent=11 // pred_region
        _
      $region44: #{tpu_custom_call.1} parent=11 // pred_fallthru
        _
      // Predicated region
      $region45: #{tpu_custom_call.1} parent=11 // pred_check
        %p494 = pneg %p240
      $region46: #{tpu_custom_call.1} parent=11 // pred_check_branch
        %496 = sbr.rel (%p494) target = $region48
      $region47: #{tpu_custom_call.1} parent=11 // pred_region
        _
      $region48: #{tpu_custom_call.1} parent=11 // pred_fallthru
        _
      // Predicated region
      $region49: #{tpu_custom_call.1} parent=11 // pred_check
        %p497 = pneg %p261
      $region50: #{tpu_custom_call.1} parent=11 // pred_check_branch
        %499 = sbr.rel (%p497) target = $region52
      $region51: #{tpu_custom_call.1} parent=11 // pred_region
        _
      $region52: #{tpu_custom_call.1} parent=11 // pred_fallthru
        _
      // Predicated region
      $region53: #{tpu_custom_call.1} parent=11 // pred_check
        %p500 = pneg %p282
      $region54: #{tpu_custom_call.1} parent=11 // pred_check_branch
        %502 = sbr.rel (%p500) target = $region56
      $region55: #{tpu_custom_call.1} parent=11 // pred_region
        _
      $region56: #{tpu_custom_call.1} parent=11 // pred_fallthru
        _
      // Predicated region
      $region57: #{tpu_custom_call.1} parent=11 // pred_check
        %p503 = pneg %p303
      $region58: #{tpu_custom_call.1} parent=11 // pred_check_branch
        %505 = sbr.rel (%p503) target = $region60
      $region59: #{tpu_custom_call.1} parent=11 // pred_region
        _
      $region60: #{tpu_custom_call.1} parent=11 // pred_fallthru
        _
      // Predicated region
      $region61: #{tpu_custom_call.1} parent=11 // pred_check
        %p506 = pneg %p324
      $region62: #{tpu_custom_call.1} parent=11 // pred_check_branch
        %508 = sbr.rel (%p506) target = $region64
      $region63: #{tpu_custom_call.1} parent=11 // pred_region
        _
      $region64: #{tpu_custom_call.1} parent=11 // pred_fallthru
        _
      // Predicated region
      $region65: #{tpu_custom_call.1} parent=11 // pred_check
        %p509 = pneg %p345
      $region66: #{tpu_custom_call.1} parent=11 // pred_check_branch
        %511 = sbr.rel (%p509) target = $region68
      $region67: #{tpu_custom_call.1} parent=11 // pred_region
        _
      $region68: #{tpu_custom_call.1} parent=11 // pred_fallthru
        _
      // Predicated region
      $region69: #{tpu_custom_call.1} parent=11 // pred_check
        %p512 = pneg %p366
      $region70: #{tpu_custom_call.1} parent=11 // pred_check_branch
        %514 = sbr.rel (%p512) target = $region72
      $region71: #{tpu_custom_call.1} parent=11 // pred_region
        _
      $region72: #{tpu_custom_call.1} parent=11 // pred_fallthru
        _
      // Predicated region
      $region73: #{tpu_custom_call.1} parent=11 // pred_check
        %p515 = pneg %p387
      $region74: #{tpu_custom_call.1} parent=11 // pred_check_branch
        %517 = sbr.rel (%p515) target = $region76
      $region75: #{tpu_custom_call.1} parent=11 // pred_region
        _
      $region76: #{tpu_custom_call.1} parent=11 // pred_fallthru
        _
      // Predicated region
      $region77: #{tpu_custom_call.1} parent=11 // pred_check
        %p518 = pneg %p408
      $region78: #{tpu_custom_call.1} parent=11 // pred_check_branch
        %520 = sbr.rel (%p518) target = $region80
      $region79: #{tpu_custom_call.1} parent=11 // pred_region
        _
      $region80: #{tpu_custom_call.1} parent=11 // pred_fallthru
        _
      // Predicated region
      $region81: #{tpu_custom_call.1} parent=11 // pred_check
        %p521 = pneg %p429
      $region82: #{tpu_custom_call.1} parent=11 // pred_check_branch
        %523 = sbr.rel (%p521) target = $region84
      $region83: #{tpu_custom_call.1} parent=11 // pred_region
        _
      $region84: #{tpu_custom_call.1} parent=11 // pred_fallthru
        _
    $region12: #{tpu_custom_call.1} parent=5 // pred_fallthru
      _
    %p524 = scmp.lt.s32.totalorder %s25, 4
    // Predicated region
    $region85: #{tpu_custom_call.1} parent=5 // pred_check
      %p525 = pneg %p524
    $region86: #{tpu_custom_call.1} parent=5 // pred_check_branch
      %527 = sbr.rel (%p525) target = $region88
    $region87: #{tpu_custom_call.1} parent=5 // pred_region
      // Predicated region
      $region89: #{tpu_custom_call.1} parent=87 // pred_check
        %p528 = pneg %p45
      $region90: #{tpu_custom_call.1} parent=87 // pred_check_branch
        %530 = sbr.rel (%p528) target = $region92
      $region91: #{tpu_custom_call.1} parent=87 // pred_region
        %p531 = scmp.lt.s32.totalorder %s25, 3
        %s532 = scalar_select %p531, %s25, 3
        %s533 = smul.addr %s532, 2
        %s534 = smul.addr %s533, 4
        %s535 = scalar_lea.vmem %s0, %s534
      $region92: #{tpu_custom_call.1} parent=87 // pred_fallthru
        _
    $region88: #{tpu_custom_call.1} parent=5 // pred_fallthru
      _
    %p536 = scmp.le.s32.totalorder 1, %s25
    %p537 = scmp.lt.s32.totalorder %s25, 5
    %p538 = pnand %p536, %p537
    %p539 = pneg %p538
    // Predicated region
    $region93: #{tpu_custom_call.1} parent=5 // pred_check
      _
    $region94: #{tpu_custom_call.1} parent=5 // pred_check_branch
      %541 = sbr.rel (%p538) target = $region96
    $region95: #{tpu_custom_call.1} parent=5 // pred_region
      %s542 = ssub.s32 %s25, 1
      %p543 = scmp.lt.s32.totalorder %s30, 3
      %s544 = scalar_select %p543, %s30, 3
      %s545 = smul.addr %s544, 2
      %s546 = smul.addr %s545, 4
      %s547 = scalar_lea.vmem %s0, %s546
      %p548 = pneg %p51
      %p549 = pneg %p48
      %p550 = pneg %p72
      %p551 = pneg %p69
      %p552 = pneg %p93
      %p553 = pneg %p90
      %p554 = pneg %p114
      %p555 = pneg %p111
      %p556 = pneg %p135
      %p557 = pneg %p132
      %p558 = pneg %p156
      %p559 = pneg %p153
      %p560 = pneg %p177
      %p561 = pneg %p174
      %p562 = pneg %p198
      %p563 = pneg %p195
      %p564 = pneg %p219
      %p565 = pneg %p216
      %p566 = pneg %p240
      %p567 = pneg %p237
      %p568 = pneg %p261
      %p569 = pneg %p258
      %p570 = pneg %p282
      %p571 = pneg %p279
      %p572 = pneg %p303
      %p573 = pneg %p300
      %p574 = pneg %p324
      %p575 = pneg %p321
      %p576 = pneg %p345
      %p577 = pneg %p342
      %p578 = pneg %p366
      %p579 = pneg %p363
      %p580 = pneg %p387
      %p581 = pneg %p384
      %p582 = pneg %p408
      %p583 = pneg %p405
      %p584 = pneg %p429
      %p585 = pneg %p426
      %p586 = pneg %p455
      %p587 = pneg %p452
      %p588 = scmp.lt.s32.totalorder %s30, 3
      %s589 = scalar_select %p588, %s30, 3
      %s590 = smul.addr %s589, 2
      %s591 = smul.addr %s590, 4
      %s592 = scalar_lea.vmem %s19, %s591
      %p593 = scmp.lt.s32.totalorder %s30, 3
      %s594 = scalar_select %p593, %s30, 3
      %s595 = smul.addr %s594, 2
      %s596 = smul.addr %s595, 4
      %s597 = scalar_lea.vmem %s0, %s596
      %p598 = scmp.lt.s32.totalorder %s30, 3
      %s599 = scalar_select %p598, %s30, 3
      %s600 = smul.addr %s599, 2
      %s601 = smul.addr %s600, 4
      %s602 = scalar_lea.vmem %s19, %s601
      %v604 = vld [vmem:[%s597] sm:$0xff]
      %v605 = vld [vmem:[%s1] sm:$0xf]
      %v606 = vld [vmem:[%s1 + $0x4] sm:$0xf]
      %v607 = vld [vmem:[%s1 + $0x8] sm:$0xf]
      %v608 = vld [vmem:[%s1 + $0xc] sm:$0xf]
      %v609 = vld [vmem:[%s1 + $0x10] sm:$0xf]
      %v610 = vld [vmem:[%s1 + $0x14] sm:$0xf]
      %v611 = vld [vmem:[%s1 + $0x18] sm:$0xf]
      %v612 = vld [vmem:[%s1 + $0x1c] sm:$0xf]
      %v613 = vld [vmem:[%s1 + $0x20] sm:$0xf]
      %v614 = vld [vmem:[%s1 + $0x24] sm:$0xf]
      %v615 = vld [vmem:[%s1 + $0x28] sm:$0xf]
      %v616 = vld [vmem:[%s1 + $0x2c] sm:$0xf]
      %v617 = vld [vmem:[%s1 + $0x30] sm:$0xf]
      %v618 = vld [vmem:[%s1 + $0x34] sm:$0xf]
      %v619 = vld [vmem:[%s1 + $0x38] sm:$0xf]
      %v620 = vld [vmem:[%s1 + $0x3c] sm:$0xf]
      %v621 = vld [vmem:[%s1 + $0x40] sm:$0xf]
      %v622 = vld [vmem:[%s1 + $0x44] sm:$0xf]
      %v623 = vld [vmem:[%s1 + $0x48] sm:$0xf]
      %v624 = vld [vmem:[%s1 + $0x4c] sm:$0xf]
      %v625 = vld [vmem:[%s1 + $0x50] sm:$0xf]
      %v626 = vld [vmem:[%s1 + $0x54] sm:$0xf]
      %v627 = vld [vmem:[%s1 + $0x58] sm:$0xf]
      %v628 = vld [vmem:[%s1 + $0x5c] sm:$0xf]
      %v629 = vld [vmem:[%s2] sm:$0x1]
      %v631 = vperm.slane %v629, 0
      %v634 = vunpack.c.l.b16 %v604
      %v635 = vunpack.c.h.b16 %v604
      %v636 = vpack.c.b16 %v634, %v634
      %v637 = vpack.c.b16 %v635, %v635
      %v663 = vunpack.c.l.b16 %v605
      %v664 = vunpack.c.l.b16 %v606
      %v665 = vunpack.c.l.b16 %v607
      %v666 = vunpack.c.l.b16 %v608
      %v667 = vunpack.c.l.b16 %v609
      %v668 = vunpack.c.l.b16 %v610
      %v669 = vunpack.c.l.b16 %v611
      %v670 = vunpack.c.l.b16 %v612
      %v671 = vunpack.c.l.b16 %v613
      %v672 = vunpack.c.l.b16 %v614
      %v673 = vunpack.c.l.b16 %v615
      %v674 = vunpack.c.l.b16 %v616
      %v675 = vunpack.c.l.b16 %v617
      %v676 = vunpack.c.l.b16 %v618
      %v677 = vunpack.c.l.b16 %v619
      %v678 = vunpack.c.l.b16 %v620
      %v679 = vunpack.c.l.b16 %v621
      %v680 = vunpack.c.l.b16 %v622
      %v681 = vunpack.c.l.b16 %v623
      %v682 = vunpack.c.l.b16 %v624
      %v683 = vunpack.c.l.b16 %v625
      %v684 = vunpack.c.l.b16 %v626
      %v685 = vunpack.c.l.b16 %v627
      %v686 = vunpack.c.l.b16 %v628
      %v687 = vpack.c.b16 %v664, %v663
      %v688 = vpack.c.b16 %v666, %v665
      %v689 = vpack.c.b16 %v668, %v667
      %v690 = vpack.c.b16 %v670, %v669
      %v691 = vpack.c.b16 %v672, %v671
      %v692 = vpack.c.b16 %v674, %v673
      %v693 = vpack.c.b16 %v676, %v675
      %v694 = vpack.c.b16 %v678, %v677
      %v695 = vpack.c.b16 %v680, %v679
      %v696 = vpack.c.b16 %v682, %v681
      %v697 = vpack.c.b16 %v684, %v683
      %v698 = vpack.c.b16 %v686, %v685
      %vm711 = vcmask 523264
      %v713 = vsel %vm711, %v637, 0
      %715 = vmatpush.bf16.msra.mxu0 %v694
      %716 = vmatpush.bf16.msra.mxu0 %v693
      %717 = vmatpush.bf16.msra.mxu0 %v692
      %718 = vmatpush.bf16.msra.mxu0 %v691
      %719 = vmatpush.bf16.msra.mxu0 %v690
      %720 = vmatpush.bf16.msra.mxu0 %v689
      %721 = vmatpush.bf16.msra.mxu0 %v688
      %722 = vmatpush.bf16.msra.mxu0 %v687
      %723 = vmatmul.bf16.gmra.mxu0 %v636
      %v724 = vpop.f32.mrf.mxu0
      %v725 = vadd.f32 %v631, %v724
      %v726 = vpop.f32.mrf.mxu0
      %727 = vdwg.mxu0
      %728 = vmatpush.bf16.msra.mxu0 0
      %729 = vmatpush.bf16.msra.mxu0 0
      %730 = vmatpush.bf16.msra.mxu0 0
      %731 = vmatpush.bf16.msra.mxu0 0
      %732 = vmatpush.bf16.msra.mxu0 %v698
      %733 = vmatpush.bf16.msra.mxu0 %v697
      %734 = vmatpush.bf16.msra.mxu0 %v696
      %735 = vmatpush.bf16.msra.mxu0 %v695
      %736 = vmatmul.bf16.gmra.mxu0 %v713
      %v737 = vpop.f32.mrf.mxu0
      %v738 = vadd.f32 %v725, %v737
      %v739 = vpop.f32.mrf.mxu0
      %740 = vdwg.mxu0
      %v741 = vld [vmem:[%s3] sm:$0x1]
      %vm742 = vcmask 516096
      %743 = vst.msk [vmem:[#allocation2] sm:$0x1] %vm742, %v741
      %v744 = vld [vmem:[%s4] sm:$0xf]
      %v745 = vadd.f32 %v738, %v744
      %vm746 = vcmask 519168
      %747 = vst.msk [vmem:[#allocation2 + $0x1] sm:$0xf] %vm746, %v745
      %v748 = vld [vmem:[%s3] sm:$0x1]
      %749 = vst.msk [vmem:[#allocation2 + $0x5] sm:$0x1] %vm742, %v748
      %v750 = vld [vmem:[%s4] sm:$0xf]
      %v752 = vrot.slane %v750, 4
      %v754 = vadd.f32 %v738, %v752
      %vm755 = vcmask 523268
      %756 = vst.msk [vmem:[#allocation2 + $0x2] sm:$0xf0] %vm755, %v754
      %v757 = vld [vmem:[#allocation2] sm:$0xff]
      %v758 = vld [vmem:[#allocation2 + $0x8] sm:$0x3]
      %v759 = vsel %vm711, %v757, 0.0
      %760 = vadd.xlane.f32.xlu0 %v759
      %v761 = vpop.xlane.xlu0 %760
      %vm762 = vcmask 517120
      %v763 = vsel %vm762, %v758, 0.0
      %764 = vadd.xlane.f32.xlu0 %v763
      %v765 = vpop.xlane.xlu0 %764
      %v766 = vrcp.pop 64.0
      %v767 = vmul.f32 64.0, %v766
      %v768 = vsub.f32 1.0, %v767
      %v769 = vmul.f32 %v766, %v768
      %v770 = vadd.f32 %v766, %v769
      %vm771 = vweird.f32 %v766
      %v772 = vsel %vm771, %v766, %v770
      %v773 = vmul.f32 %v761, %v772
      %v774 = vmul.f32 %v765, %v772
      %v775 = vsub.f32 %v757, %v773
      %v776 = vsub.f32 %v758, %v774
      %v777 = vmul.f32 %v775, %v775
      %v778 = vmul.f32 %v776, %v776
      %v779 = vsel %vm711, %v777, 0.0
      %780 = vadd.xlane.f32.xlu0 %v779
      %v781 = vpop.xlane.xlu0 %780
      %v782 = vsel %vm762, %v778, 0.0
      %783 = vadd.xlane.f32.xlu0 %v782
      %v784 = vpop.xlane.xlu0 %783
      %v785 = vmul.f32 %v781, %v772
      %v786 = vmul.f32 %v784, %v772
      %v787 = vadd.f32 %v785, 1e-06
      %v788 = vadd.f32 %v786, 1e-06
      %v789 = vrsqrt.pop %v787
      %v790 = vmul.f32 %v789, %v787
      %v791 = vmul.f32 %v790, %v789
      %v792 = vmul.f32 0.5, %v791
      %v793 = vsub.f32 1.5, %v792
      %v794 = vmul.f32 %v789, %v793
      %vm795 = vweird.f32 %v787
      %vm796 = vweird.f32 %v789
      %vm797 = vmor %vm795, %vm796
      %v798 = vsel %vm797, %v789, %v794
      %v799 = vrsqrt.pop %v788
      %v800 = vmul.f32 %v799, %v788
      %v801 = vmul.f32 %v800, %v799
      %v802 = vmul.f32 0.5, %v801
      %v803 = vsub.f32 1.5, %v802
      %v804 = vmul.f32 %v799, %v803
      %vm805 = vweird.f32 %v788
      %vm806 = vweird.f32 %v799
      %vm807 = vmor %vm805, %vm806
      %v808 = vsel %vm807, %v799, %v804
      %v809 = vmul.f32 %v775, %v798
      %v810 = vmul.f32 %v776, %v808
      %v811 = vld [vmem:[%s5] sm:$0x1]
      %v813 = vperm.slane %v811, 0
      %v815 = vmul.f32 %v809, %v813
      %v816 = vmul.f32 %v810, %v813
      %v817 = vld [vmem:[%s6] sm:$0x1]
      %v819 = vperm.slane %v817, 0
      %v821 = vadd.f32 %v815, %v819
      %v822 = vadd.f32 %v816, %v819
      %v823 = vpack.c.bf16 %v822, %v821
      %v824 = vld [vmem:[%s7] sm:$0xff]
      %v825 = vld [vmem:[%s7 + $0x8] sm:$0xff]
      %v826 = vld [vmem:[%s7 + $0x10] sm:$0xff]
      %v827 = vld [vmem:[%s7 + $0x18] sm:$0xff]
      %v828 = vld [vmem:[%s7 + $0x20] sm:$0xff]
      %v829 = vld [vmem:[%s7 + $0x28] sm:$0xff]
      %v830 = vld [vmem:[%s7 + $0x30] sm:$0xff]
      %v831 = vld [vmem:[%s7 + $0x38] sm:$0xff]
      %v832 = vld [vmem:[%s8] sm:$0x3]
      %v834 = vperm.slane %v832, 0
      %v835 = vperm.slane %v832, 1
      %v846 = vunpack.c.l.b16 %v824
      %v847 = vunpack.c.h.b16 %v824
      %v848 = vunpack.c.l.b16 %v825
      %v849 = vunpack.c.h.b16 %v825
      %v850 = vunpack.c.l.b16 %v826
      %v851 = vunpack.c.h.b16 %v826
      %v852 = vunpack.c.l.b16 %v827
      %v853 = vunpack.c.h.b16 %v827
      %v854 = vunpack.c.l.b16 %v828
      %v855 = vunpack.c.h.b16 %v828
      %v856 = vunpack.c.l.b16 %v829
      %v857 = vunpack.c.h.b16 %v829
      %v858 = vunpack.c.l.b16 %v830
      %v859 = vunpack.c.h.b16 %v830
      %v860 = vunpack.c.l.b16 %v831
      %v861 = vunpack.c.h.b16 %v831
      %v862 = vpack.c.b16 %v848, %v846
      %v863 = vpack.c.b16 %v849, %v847
      %v864 = vpack.c.b16 %v852, %v850
      %v865 = vpack.c.b16 %v853, %v851
      %v866 = vpack.c.b16 %v856, %v854
      %v867 = vpack.c.b16 %v857, %v855
      %v868 = vpack.c.b16 %v860, %v858
      %v869 = vpack.c.b16 %v861, %v859
      %v879 = vsel %vm711, %v823, 0
      %881 = vmatpush.bf16.msra.mxu0 0
      %882 = vmatpush.bf16.msra.mxu0 0
      %883 = vmatpush.bf16.msra.mxu0 0
      %884 = vmatpush.bf16.msra.mxu0 0
      %885 = vmatpush.bf16.msra.mxu0 %v868
      %886 = vmatpush.bf16.msra.mxu0 %v866
      %887 = vmatpush.bf16.msra.mxu0 %v864
      %888 = vmatpush.bf16.msra.mxu0 %v862
      %889 = vmatmul.bf16.gmra.mxu0 %v879
      %v890 = vpop.f32.mrf.mxu0
      %v891 = vadd.f32 %v834, %v890
      %v892 = vpop.f32.mrf.mxu0
      %v893 = vadd.f32 %v834, %v892
      %894 = vdwg.mxu0
      %895 = vmatpush.bf16.msra.mxu0 0
      %896 = vmatpush.bf16.msra.mxu0 0
      %897 = vmatpush.bf16.msra.mxu0 0
      %898 = vmatpush.bf16.msra.mxu0 0
      %899 = vmatpush.bf16.msra.mxu0 %v869
      %900 = vmatpush.bf16.msra.mxu0 %v867
      %901 = vmatpush.bf16.msra.mxu0 %v865
      %902 = vmatpush.bf16.msra.mxu0 %v863
      %903 = vmatmul.bf16.gmra.mxu0 %v879
      %v904 = vpop.f32.mrf.mxu0
      %v905 = vadd.f32 %v835, %v904
      %v906 = vpop.f32.mrf.mxu0
      %v907 = vadd.f32 %v835, %v906
      %908 = vdwg.mxu0
      %v909 = vmul.f32 %v891, 0.25
      %v910 = vmul.f32 %v893, 0.25
      %v911 = vpack.c.bf16 %v909, %v909
      %v912 = vpack.c.bf16 %v910, %v910
      %v913 = vpack.c.bf16 %v891, %v891
      %v914 = vpack.c.bf16 %v893, %v893
      %v915 = vpack.c.bf16 %v905, %v905
      %v916 = vpack.c.bf16 %v907, %v907
      %v918 = vunpack.c.l.b16 %v913
      %v919 = vpack.c.b16 %v918, %v918
      %920 = vrot.lane.b32.xlu0 %v919, 64
      %v921 = vpop.permute.xlu0 %920
      %vm922 = vcmask 130048
      %v924 = vsel %vm922, %v911, 0
      %v927 = vsel %vm922, %v921, 0
      %929 = vmatpush.bf16.xpose.msra.mxu0 0
      %930 = vmatpush.bf16.xpose.msra.mxu0 0
      %931 = vmatpush.bf16.xpose.msra.mxu0 0
      %932 = vmatpush.bf16.xpose.msra.mxu0 0
      %933 = vmatpush.bf16.xpose.msra.mxu0 0
      %934 = vmatpush.bf16.xpose.msra.mxu0 0
      %935 = vmatpush.bf16.xpose.msra.mxu0 0
      %936 = vmatpush.bf16.xpose.msra.mxu0 %v927
      %937 = vmatmul.bf16.gmra.mxu0 %v924
      %v938 = vpop.f32.mrf.mxu0
      %v939 = vadd.f32 0.0, %v938
      %v940 = vpop.f32.mrf.mxu0
      %941 = vdwg.mxu0
      %vm942 = vcmask 36864
      %v943 = vsel %vm942, %v939, -inf
      %944 = vmax.xlane.f32.xlu0 %v943
      %v945 = vpop.xlane.xlu0 %944
      %v946 = vsub.f32 %v939, %v945
      %v947 = vmul.f32 %v946, 1.442695
      %v948 = vpow.pop %v947
      %v949 = vsel %vm942, %v948, 0.0
      %950 = vadd.xlane.f32.xlu0 %v949
      %v951 = vpop.xlane.xlu0 %950
      %v952 = vrcp.pop %v951
      %v953 = vmul.f32 %v948, %v952
      %v954 = vpack.c.bf16 %v953, %v953
      %vm955 = vcmask 39936
      %v957 = vsel %vm955, %v954, 0
      %vm959 = vcmask 1041408
      %vm960 = vcmask 1042432
      %v961 = vsel %vm959, 4294967295, 65535
      %v962 = vsel %vm960, %v961, 0
      %v964 = vand.u32 %v915, %v962
      %966 = vmatpush.bf16.msra.mxu0 0
      %967 = vmatpush.bf16.msra.mxu0 0
      %968 = vmatpush.bf16.msra.mxu0 0
      %969 = vmatpush.bf16.msra.mxu0 0
      %970 = vmatpush.bf16.msra.mxu0 0
      %971 = vmatpush.bf16.msra.mxu0 0
      %972 = vmatpush.bf16.msra.mxu0 0
      %973 = vmatpush.bf16.msra.mxu0 %v964
      %974 = vmatmul.bf16.gmra.mxu0 %v957
      %v975 = vpop.f32.mrf.mxu0
      %v976 = vadd.f32 0.0, %v975
      %v977 = vpop.f32.mrf.mxu0
      %978 = vdwg.mxu0
      %v980 = vunpack.c.l.b16 %v911
      %v981 = vpack.c.b16 %v980, %v980
      %982 = vrot.lane.b32.xlu0 %v981, 112
      %v983 = vpop.permute.xlu0 %982
      %984 = vrot.lane.b32.xlu0 %v919, 48
      %v985 = vpop.permute.xlu0 %984
      %v987 = vsel %vm922, %v983, 0
      %v990 = vsel %vm922, %v985, 0
      %992 = vmatpush.bf16.xpose.msra.mxu0 0
      %993 = vmatpush.bf16.xpose.msra.mxu0 0
      %994 = vmatpush.bf16.xpose.msra.mxu0 0
      %995 = vmatpush.bf16.xpose.msra.mxu0 0
      %996 = vmatpush.bf16.xpose.msra.mxu0 0
      %997 = vmatpush.bf16.xpose.msra.mxu0 0
      %998 = vmatpush.bf16.xpose.msra.mxu0 0
      %999 = vmatpush.bf16.xpose.msra.mxu0 %v990
      %1000 = vmatmul.bf16.gmra.mxu0 %v987
      %v1001 = vpop.f32.mrf.mxu0
      %v1002 = vadd.f32 0.0, %v1001
      %v1003 = vpop.f32.mrf.mxu0
      %1004 = vdwg.mxu0
      %v1005 = vsel %vm942, %v1002, -inf
      %1006 = vmax.xlane.f32.xlu0 %v1005
      %v1007 = vpop.xlane.xlu0 %1006
      %v1008 = vsub.f32 %v1002, %v1007
      %v1009 = vmul.f32 %v1008, 1.442695
      %v1010 = vpow.pop %v1009
      %v1011 = vsel %vm942, %v1010, 0.0
      %1012 = vadd.xlane.f32.xlu0 %v1011
      %v1013 = vpop.xlane.xlu0 %1012
      %v1014 = vrcp.pop %v1013
      %v1015 = vmul.f32 %v1010, %v1014
      %v1016 = vpack.c.bf16 %v1015, %v1015
      %v1018 = vunpack.c.l.b16 %v915
      %v1019 = vpack.c.b16 %v1018, %v1018
      %1020 = vrot.lane.b32.xlu0 %v1019, 112
      %v1021 = vpop.permute.xlu0 %1020
      %v1023 = vsel %vm955, %v1016, 0
      %v1026 = vand.u32 %v1021, %v962
      %1028 = vmatpush.bf16.msra.mxu0 0
      %1029 = vmatpush.bf16.msra.mxu0 0
      %1030 = vmatpush.bf16.msra.mxu0 0
      %1031 = vmatpush.bf16.msra.mxu0 0
      %1032 = vmatpush.bf16.msra.mxu0 0
      %1033 = vmatpush.bf16.msra.mxu0 0
      %1034 = vmatpush.bf16.msra.mxu0 0
      %1035 = vmatpush.bf16.msra.mxu0 %v1026
      %1036 = vmatmul.bf16.gmra.mxu0 %v1023
      %v1037 = vpop.f32.mrf.mxu0
      %v1038 = vadd.f32 0.0, %v1037
      %v1039 = vpop.f32.mrf.mxu0
      %1040 = vdwg.mxu0
      %1041 = vrot.lane.b32.xlu0 %v981, 96
      %v1042 = vpop.permute.xlu0 %1041
      %1043 = vrot.lane.b32.xlu0 %v919, 32
      %v1044 = vpop.permute.xlu0 %1043
      %v1046 = vsel %vm922, %v1042, 0
      %v1049 = vsel %vm922, %v1044, 0
      %1051 = vmatpush.bf16.xpose.msra.mxu0 0
      %1052 = vmatpush.bf16.xpose.msra.mxu0 0
      %1053 = vmatpush.bf16.xpose.msra.mxu0 0
      %1054 = vmatpush.bf16.xpose.msra.mxu0 0
      %1055 = vmatpush.bf16.xpose.msra.mxu0 0
      %1056 = vmatpush.bf16.xpose.msra.mxu0 0
      %1057 = vmatpush.bf16.xpose.msra.mxu0 0
      %1058 = vmatpush.bf16.xpose.msra.mxu0 %v1049
      %1059 = vmatmul.bf16.gmra.mxu0 %v1046
      %v1060 = vpop.f32.mrf.mxu0
      %v1061 = vadd.f32 0.0, %v1060
      %v1062 = vpop.f32.mrf.mxu0
      %1063 = vdwg.mxu0
      %v1064 = vsel %vm942, %v1061, -inf
      %1065 = vmax.xlane.f32.xlu0 %v1064
      %v1066 = vpop.xlane.xlu0 %1065
      %v1067 = vsub.f32 %v1061, %v1066
      %v1068 = vmul.f32 %v1067, 1.442695
      %v1069 = vpow.pop %v1068
      %v1070 = vsel %vm942, %v1069, 0.0
      %1071 = vadd.xlane.f32.xlu0 %v1070
      %v1072 = vpop.xlane.xlu0 %1071
      %v1073 = vrcp.pop %v1072
      %v1074 = vmul.f32 %v1069, %v1073
      %v1075 = vpack.c.bf16 %v1074, %v1074
      %1076 = vrot.lane.b32.xlu0 %v1019, 96
      %v1077 = vpop.permute.xlu0 %1076
      %v1079 = vsel %vm955, %v1075, 0
      %v1082 = vand.u32 %v1077, %v962
      %1084 = vmatpush.bf16.msra.mxu0 0
      %1085 = vmatpush.bf16.msra.mxu0 0
      %1086 = vmatpush.bf16.msra.mxu0 0
      %1087 = vmatpush.bf16.msra.mxu0 0
      %1088 = vmatpush.bf16.msra.mxu0 0
      %1089 = vmatpush.bf16.msra.mxu0 0
      %1090 = vmatpush.bf16.msra.mxu0 0
      %1091 = vmatpush.bf16.msra.mxu0 %v1082
      %1092 = vmatmul.bf16.gmra.mxu0 %v1079
      %v1093 = vpop.f32.mrf.mxu0
      %v1094 = vadd.f32 0.0, %v1093
      %v1095 = vpop.f32.mrf.mxu0
      %1096 = vdwg.mxu0
      %1097 = vrot.lane.b32.xlu0 %v981, 80
      %v1098 = vpop.permute.xlu0 %1097
      %1099 = vrot.lane.b32.xlu0 %v919, 16
      %v1100 = vpop.permute.xlu0 %1099
      %v1102 = vsel %vm922, %v1098, 0
      %v1105 = vsel %vm922, %v1100, 0
      %1107 = vmatpush.bf16.xpose.msra.mxu0 0
      %1108 = vmatpush.bf16.xpose.msra.mxu0 0
      %1109 = vmatpush.bf16.xpose.msra.mxu0 0
      %1110 = vmatpush.bf16.xpose.msra.mxu0 0
      %1111 = vmatpush.bf16.xpose.msra.mxu0 0
      %1112 = vmatpush.bf16.xpose.msra.mxu0 0
      %1113 = vmatpush.bf16.xpose.msra.mxu0 0
      %1114 = vmatpush.bf16.xpose.msra.mxu0 %v1105
      %1115 = vmatmul.bf16.gmra.mxu0 %v1102
      %v1116 = vpop.f32.mrf.mxu0
      %v1117 = vadd.f32 0.0, %v1116
      %v1118 = vpop.f32.mrf.mxu0
      %1119 = vdwg.mxu0
      %v1120 = vsel %vm942, %v1117, -inf
      %1121 = vmax.xlane.f32.xlu0 %v1120
      %v1122 = vpop.xlane.xlu0 %1121
      %v1123 = vsub.f32 %v1117, %v1122
      %v1124 = vmul.f32 %v1123, 1.442695
      %v1125 = vpow.pop %v1124
      %v1126 = vsel %vm942, %v1125, 0.0
      %1127 = vadd.xlane.f32.xlu0 %v1126
      %v1128 = vpop.xlane.xlu0 %1127
      %v1129 = vrcp.pop %v1128
      %v1130 = vmul.f32 %v1125, %v1129
      %v1131 = vpack.c.bf16 %v1130, %v1130
      %1132 = vrot.lane.b32.xlu0 %v1019, 80
      %v1133 = vpop.permute.xlu0 %1132
      %v1135 = vsel %vm955, %v1131, 0
      %v1138 = vand.u32 %v1133, %v962
      %1140 = vmatpush.bf16.msra.mxu0 0
      %1141 = vmatpush.bf16.msra.mxu0 0
      %1142 = vmatpush.bf16.msra.mxu0 0
      %1143 = vmatpush.bf16.msra.mxu0 0
      %1144 = vmatpush.bf16.msra.mxu0 0
      %1145 = vmatpush.bf16.msra.mxu0 0
      %1146 = vmatpush.bf16.msra.mxu0 0
      %1147 = vmatpush.bf16.msra.mxu0 %v1138
      %1148 = vmatmul.bf16.gmra.mxu0 %v1135
      %v1149 = vpop.f32.mrf.mxu0
      %v1150 = vadd.f32 0.0, %v1149
      %v1151 = vpop.f32.mrf.mxu0
      %1152 = vdwg.mxu0
      %1154 = vrot.lane.b32.xlu0 %v1038, 16
      %v1155 = vpop.permute.xlu0 %1154
      %1158 = vrot.lane.b32.xlu0 %v1094, 32
      %v1159 = vpop.permute.xlu0 %1158
      %1162 = vrot.lane.b32.xlu0 %v1150, 48
      %v1163 = vpop.permute.xlu0 %1162
      %v1165 = vsel %vm922, %v976, %v1155
      %vm1166 = vcmask 261120
      %v1167 = vsel %vm1166, %v1165, %v1159
      %vm1168 = vcmask 392192
      %v1169 = vsel %vm1168, %v1167, %v1163
      %v1171 = vunpack.c.l.b16 %v912
      %v1172 = vpack.c.b16 %v1171, %v980
      %v1174 = vshrl.u32 %v1172, 16
      %v1176 = vrot.slane %v1174, 2
      %v1177 = vshll.u32 %v1172, 16
      %v1179 = vrot.slane %v1177, 3
      %v1180 = vor.u32 %v1176, %v1179
      %v1182 = vunpack.c.l.b16 %v914
      %v1183 = vpack.c.b16 %v1182, %v918
      %v1185 = vshrl.u32 %v1183, 16
      %v1187 = vrot.slane %v1185, 2
      %v1188 = vshll.u32 %v1183, 16
      %v1190 = vrot.slane %v1188, 3
      %v1191 = vor.u32 %v1187, %v1190
      %1192 = vrot.lane.b32.xlu0 %v1191, 64
      %v1193 = vpop.permute.xlu0 %1192
      %v1195 = vsel %vm922, %v1180, 0
      %v1198 = vsel %vm922, %v1193, 0
      %1200 = vmatpush.bf16.xpose.msra.mxu0 0
      %1201 = vmatpush.bf16.xpose.msra.mxu0 0
      %1202 = vmatpush.bf16.xpose.msra.mxu0 0
      %1203 = vmatpush.bf16.xpose.msra.mxu0 0
      %1204 = vmatpush.bf16.xpose.msra.mxu0 0
      %1205 = vmatpush.bf16.xpose.msra.mxu0 0
      %1206 = vmatpush.bf16.xpose.msra.mxu0 0
      %1207 = vmatpush.bf16.xpose.msra.mxu0 %v1198
      %1208 = vmatmul.bf16.gmra.mxu0 %v1195
      %v1209 = vpop.f32.mrf.mxu0
      %v1210 = vadd.f32 0.0, %v1209
      %v1211 = vpop.f32.mrf.mxu0
      %1212 = vdwg.mxu0
      %v1213 = vsel %vm942, %v1210, -inf
      %1214 = vmax.xlane.f32.xlu0 %v1213
      %v1215 = vpop.xlane.xlu0 %1214
      %v1216 = vsub.f32 %v1210, %v1215
      %v1217 = vmul.f32 %v1216, 1.442695
      %v1218 = vpow.pop %v1217
      %v1219 = vsel %vm942, %v1218, 0.0
      %1220 = vadd.xlane.f32.xlu0 %v1219
      %v1221 = vpop.xlane.xlu0 %1220
      %v1222 = vrcp.pop %v1221
      %v1223 = vmul.f32 %v1218, %v1222
      %v1224 = vpack.c.bf16 %v1223, %v1223
      %v1226 = vunpack.c.l.b16 %v916
      %v1227 = vpack.c.b16 %v1226, %v1018
      %v1229 = vshrl.u32 %v1227, 16
      %v1231 = vrot.slane %v1229, 2
      %v1232 = vshll.u32 %v1227, 16
      %v1234 = vrot.slane %v1232, 3
      %v1235 = vor.u32 %v1231, %v1234
      %v1237 = vsel %vm955, %v1224, 0
      %v1240 = vand.u32 %v1235, %v962
      %1242 = vmatpush.bf16.msra.mxu0 0
      %1243 = vmatpush.bf16.msra.mxu0 0
      %1244 = vmatpush.bf16.msra.mxu0 0
      %1245 = vmatpush.bf16.msra.mxu0 0
      %1246 = vmatpush.bf16.msra.mxu0 0
      %1247 = vmatpush.bf16.msra.mxu0 0
      %1248 = vmatpush.bf16.msra.mxu0 0
      %1249 = vmatpush.bf16.msra.mxu0 %v1240
      %1250 = vmatmul.bf16.gmra.mxu0 %v1237
      %v1251 = vpop.f32.mrf.mxu0
      %v1252 = vadd.f32 0.0, %v1251
      %v1253 = vpop.f32.mrf.mxu0
      %1254 = vdwg.mxu0
      %1255 = vrot.lane.b32.xlu0 %v1180, 112
      %v1256 = vpop.permute.xlu0 %1255
      %1257 = vrot.lane.b32.xlu0 %v1191, 48
      %v1258 = vpop.permute.xlu0 %1257
      %v1260 = vsel %vm922, %v1256, 0
      %v1263 = vsel %vm922, %v1258, 0
      %1265 = vmatpush.bf16.xpose.msra.mxu0 0
      %1266 = vmatpush.bf16.xpose.msra.mxu0 0
      %1267 = vmatpush.bf16.xpose.msra.mxu0 0
      %1268 = vmatpush.bf16.xpose.msra.mxu0 0
      %1269 = vmatpush.bf16.xpose.msra.mxu0 0
      %1270 = vmatpush.bf16.xpose.msra.mxu0 0
      %1271 = vmatpush.bf16.xpose.msra.mxu0 0
      %1272 = vmatpush.bf16.xpose.msra.mxu0 %v1263
      %1273 = vmatmul.bf16.gmra.mxu0 %v1260
      %v1274 = vpop.f32.mrf.mxu0
      %v1275 = vadd.f32 0.0, %v1274
      %v1276 = vpop.f32.mrf.mxu0
      %1277 = vdwg.mxu0
      %v1278 = vsel %vm942, %v1275, -inf
      %1279 = vmax.xlane.f32.xlu0 %v1278
      %v1280 = vpop.xlane.xlu0 %1279
      %v1281 = vsub.f32 %v1275, %v1280
      %v1282 = vmul.f32 %v1281, 1.442695
      %v1283 = vpow.pop %v1282
      %v1284 = vsel %vm942, %v1283, 0.0
      %1285 = vadd.xlane.f32.xlu0 %v1284
      %v1286 = vpop.xlane.xlu0 %1285
      %v1287 = vrcp.pop %v1286
      %v1288 = vmul.f32 %v1283, %v1287
      %v1289 = vpack.c.bf16 %v1288, %v1288
      %1290 = vrot.lane.b32.xlu0 %v1235, 112
      %v1291 = vpop.permute.xlu0 %1290
      %v1293 = vsel %vm955, %v1289, 0
      %v1296 = vand.u32 %v1291, %v962
      %1298 = vmatpush.bf16.msra.mxu0 0
      %1299 = vmatpush.bf16.msra.mxu0 0
      %1300 = vmatpush.bf16.msra.mxu0 0
      %1301 = vmatpush.bf16.msra.mxu0 0
      %1302 = vmatpush.bf16.msra.mxu0 0
      %1303 = vmatpush.bf16.msra.mxu0 0
      %1304 = vmatpush.bf16.msra.mxu0 0
      %1305 = vmatpush.bf16.msra.mxu0 %v1296
      %1306 = vmatmul.bf16.gmra.mxu0 %v1293
      %v1307 = vpop.f32.mrf.mxu0
      %v1308 = vadd.f32 0.0, %v1307
      %v1309 = vpop.f32.mrf.mxu0
      %1310 = vdwg.mxu0
      %1311 = vrot.lane.b32.xlu0 %v1180, 96
      %v1312 = vpop.permute.xlu0 %1311
      %1313 = vrot.lane.b32.xlu0 %v1191, 32
      %v1314 = vpop.permute.xlu0 %1313
      %v1316 = vsel %vm922, %v1312, 0
      %v1319 = vsel %vm922, %v1314, 0
      %1321 = vmatpush.bf16.xpose.msra.mxu0 0
      %1322 = vmatpush.bf16.xpose.msra.mxu0 0
      %1323 = vmatpush.bf16.xpose.msra.mxu0 0
      %1324 = vmatpush.bf16.xpose.msra.mxu0 0
      %1325 = vmatpush.bf16.xpose.msra.mxu0 0
      %1326 = vmatpush.bf16.xpose.msra.mxu0 0
      %1327 = vmatpush.bf16.xpose.msra.mxu0 0
      %1328 = vmatpush.bf16.xpose.msra.mxu0 %v1319
      %1329 = vmatmul.bf16.gmra.mxu0 %v1316
      %v1330 = vpop.f32.mrf.mxu0
      %v1331 = vadd.f32 0.0, %v1330
      %v1332 = vpop.f32.mrf.mxu0
      %1333 = vdwg.mxu0
      %v1334 = vsel %vm942, %v1331, -inf
      %1335 = vmax.xlane.f32.xlu0 %v1334
      %v1336 = vpop.xlane.xlu0 %1335
      %v1337 = vsub.f32 %v1331, %v1336
      %v1338 = vmul.f32 %v1337, 1.442695
      %v1339 = vpow.pop %v1338
      %v1340 = vsel %vm942, %v1339, 0.0
      %1341 = vadd.xlane.f32.xlu0 %v1340
      %v1342 = vpop.xlane.xlu0 %1341
      %v1343 = vrcp.pop %v1342
      %v1344 = vmul.f32 %v1339, %v1343
      %v1345 = vpack.c.bf16 %v1344, %v1344
      %1346 = vrot.lane.b32.xlu0 %v1235, 96
      %v1347 = vpop.permute.xlu0 %1346
      %v1349 = vsel %vm955, %v1345, 0
      %v1352 = vand.u32 %v1347, %v962
      %1354 = vmatpush.bf16.msra.mxu0 0
      %1355 = vmatpush.bf16.msra.mxu0 0
      %1356 = vmatpush.bf16.msra.mxu0 0
      %1357 = vmatpush.bf16.msra.mxu0 0
      %1358 = vmatpush.bf16.msra.mxu0 0
      %1359 = vmatpush.bf16.msra.mxu0 0
      %1360 = vmatpush.bf16.msra.mxu0 0
      %1361 = vmatpush.bf16.msra.mxu0 %v1352
      %1362 = vmatmul.bf16.gmra.mxu0 %v1349
      %v1363 = vpop.f32.mrf.mxu0
      %v1364 = vadd.f32 0.0, %v1363
      %v1365 = vpop.f32.mrf.mxu0
      %1366 = vdwg.mxu0
      %1367 = vrot.lane.b32.xlu0 %v1180, 80
      %v1368 = vpop.permute.xlu0 %1367
      %1369 = vrot.lane.b32.xlu0 %v1191, 16
      %v1370 = vpop.permute.xlu0 %1369
      %v1372 = vsel %vm922, %v1368, 0
      %v1375 = vsel %vm922, %v1370, 0
      %1377 = vmatpush.bf16.xpose.msra.mxu0 0
      %1378 = vmatpush.bf16.xpose.msra.mxu0 0
      %1379 = vmatpush.bf16.xpose.msra.mxu0 0
      %1380 = vmatpush.bf16.xpose.msra.mxu0 0
      %1381 = vmatpush.bf16.xpose.msra.mxu0 0
      %1382 = vmatpush.bf16.xpose.msra.mxu0 0
      %1383 = vmatpush.bf16.xpose.msra.mxu0 0
      %1384 = vmatpush.bf16.xpose.msra.mxu0 %v1375
      %1385 = vmatmul.bf16.gmra.mxu0 %v1372
      %v1386 = vpop.f32.mrf.mxu0
      %v1387 = vadd.f32 0.0, %v1386
      %v1388 = vpop.f32.mrf.mxu0
      %1389 = vdwg.mxu0
      %v1390 = vsel %vm942, %v1387, -inf
      %1391 = vmax.xlane.f32.xlu0 %v1390
      %v1392 = vpop.xlane.xlu0 %1391
      %v1393 = vsub.f32 %v1387, %v1392
      %v1394 = vmul.f32 %v1393, 1.442695
      %v1395 = vpow.pop %v1394
      %v1396 = vsel %vm942, %v1395, 0.0
      %1397 = vadd.xlane.f32.xlu0 %v1396
      %v1398 = vpop.xlane.xlu0 %1397
      %v1399 = vrcp.pop %v1398
      %v1400 = vmul.f32 %v1395, %v1399
      %v1401 = vpack.c.bf16 %v1400, %v1400
      %1402 = vrot.lane.b32.xlu0 %v1235, 80
      %v1403 = vpop.permute.xlu0 %1402
      %v1405 = vsel %vm955, %v1401, 0
      %v1408 = vand.u32 %v1403, %v962
      %1410 = vmatpush.bf16.msra.mxu0 0
      %1411 = vmatpush.bf16.msra.mxu0 0
      %1412 = vmatpush.bf16.msra.mxu0 0
      %1413 = vmatpush.bf16.msra.mxu0 0
      %1414 = vmatpush.bf16.msra.mxu0 0
      %1415 = vmatpush.bf16.msra.mxu0 0
      %1416 = vmatpush.bf16.msra.mxu0 0
      %1417 = vmatpush.bf16.msra.mxu0 %v1408
      %1418 = vmatmul.bf16.gmra.mxu0 %v1405
      %v1419 = vpop.f32.mrf.mxu0
      %v1420 = vadd.f32 0.0, %v1419
      %v1421 = vpop.f32.mrf.mxu0
      %1422 = vdwg.mxu0
      %1424 = vrot.lane.b32.xlu0 %v1308, 16
      %v1425 = vpop.permute.xlu0 %1424
      %1428 = vrot.lane.b32.xlu0 %v1364, 32
      %v1429 = vpop.permute.xlu0 %1428
      %1432 = vrot.lane.b32.xlu0 %v1420, 48
      %v1433 = vpop.permute.xlu0 %1432
      %v1435 = vsel %vm922, %v1252, %v1425
      %v1436 = vsel %vm1166, %v1435, %v1429
      %v1437 = vsel %vm1168, %v1436, %v1433
      %v1439 = vrot.slane %v1437, 3
      %vm1441 = vcmask 1044480
      %v1442 = vsel %vm1441, %v1169, %v1439
      %v1443 = vpack.c.bf16 %v1439, %v1442
      %v1444 = vld [vmem:[%s9] sm:$0xf]
      %v1445 = vld [vmem:[%s9 + $0x4] sm:$0xf]
      %v1446 = vld [vmem:[%s9 + $0x8] sm:$0xf]
      %v1447 = vld [vmem:[%s9 + $0xc] sm:$0xf]
      %v1448 = vld [vmem:[%s9 + $0x10] sm:$0xf]
      %v1449 = vld [vmem:[%s9 + $0x14] sm:$0xf]
      %v1450 = vld [vmem:[%s9 + $0x18] sm:$0xf]
      %v1451 = vld [vmem:[%s9 + $0x1c] sm:$0xf]
      %v1460 = vunpack.c.l.b16 %v1444
      %v1461 = vunpack.c.l.b16 %v1445
      %v1462 = vunpack.c.l.b16 %v1446
      %v1463 = vunpack.c.l.b16 %v1447
      %v1464 = vunpack.c.l.b16 %v1448
      %v1465 = vunpack.c.l.b16 %v1449
      %v1466 = vunpack.c.l.b16 %v1450
      %v1467 = vunpack.c.l.b16 %v1451
      %v1468 = vpack.c.b16 %v1461, %v1460
      %v1469 = vpack.c.b16 %v1463, %v1462
      %v1470 = vpack.c.b16 %v1465, %v1464
      %v1471 = vpack.c.b16 %v1467, %v1466
      %v1477 = vsel %vm711, %v1443, 0
      %1479 = vmatpush.bf16.msra.mxu0 0
      %1480 = vmatpush.bf16.msra.mxu0 0
      %1481 = vmatpush.bf16.msra.mxu0 0
      %1482 = vmatpush.bf16.msra.mxu0 0
      %1483 = vmatpush.bf16.msra.mxu0 %v1471
      %1484 = vmatpush.bf16.msra.mxu0 %v1470
      %1485 = vmatpush.bf16.msra.mxu0 %v1469
      %1486 = vmatpush.bf16.msra.mxu0 %v1468
      %1487 = vmatmul.bf16.gmra.mxu0 %v1477
      %v1488 = vpop.f32.mrf.mxu0
      %v1489 = vadd.f32 0.0, %v1488
      %v1490 = vpop.f32.mrf.mxu0
      %v1491 = vadd.f32 0.0, %v1490
      %1492 = vdwg.mxu0
      %v1493 = vadd.f32 %v757, %v1489
      %v1494 = vadd.f32 %v758, %v1491
      %v1495 = vld [vmem:[%s10] sm:$0x1]
      %v1497 = vperm.slane %v1495, 0
      %v1499 = vadd.f32 %v1493, %v1497
      %v1500 = vadd.f32 %v1494, %v1497
      %v1501 = vsel %vm711, %v1499, 0.0
      %1502 = vadd.xlane.f32.xlu0 %v1501
      %v1503 = vpop.xlane.xlu0 %1502
      %v1504 = vsel %vm762, %v1500, 0.0
      %1505 = vadd.xlane.f32.xlu0 %v1504
      %v1506 = vpop.xlane.xlu0 %1505
      %v1507 = vmul.f32 %v1503, %v772
      %v1508 = vmul.f32 %v1506, %v772
      %v1509 = vsub.f32 %v1499, %v1507
      %v1510 = vsub.f32 %v1500, %v1508
      %v1511 = vmul.f32 %v1509, %v1509
      %v1512 = vmul.f32 %v1510, %v1510
      %v1513 = vsel %vm711, %v1511, 0.0
      %1514 = vadd.xlane.f32.xlu0 %v1513
      %v1515 = vpop.xlane.xlu0 %1514
      %v1516 = vsel %vm762, %v1512, 0.0
      %1517 = vadd.xlane.f32.xlu0 %v1516
      %v1518 = vpop.xlane.xlu0 %1517
      %v1519 = vmul.f32 %v1515, %v772
      %v1520 = vmul.f32 %v1518, %v772
      %v1521 = vadd.f32 %v1519, 1e-06
      %v1522 = vadd.f32 %v1520, 1e-06
      %v1523 = vrsqrt.pop %v1521
      %v1524 = vmul.f32 %v1523, %v1521
      %v1525 = vmul.f32 %v1524, %v1523
      %v1526 = vmul.f32 0.5, %v1525
      %v1527 = vsub.f32 1.5, %v1526
      %v1528 = vmul.f32 %v1523, %v1527
      %vm1529 = vweird.f32 %v1521
      %vm1530 = vweird.f32 %v1523
      %vm1531 = vmor %vm1529, %vm1530
      %v1532 = vsel %vm1531, %v1523, %v1528
      %v1533 = vrsqrt.pop %v1522
      %v1534 = vmul.f32 %v1533, %v1522
      %v1535 = vmul.f32 %v1534, %v1533
      %v1536 = vmul.f32 0.5, %v1535
      %v1537 = vsub.f32 1.5, %v1536
      %v1538 = vmul.f32 %v1533, %v1537
      %vm1539 = vweird.f32 %v1522
      %vm1540 = vweird.f32 %v1533
      %vm1541 = vmor %vm1539, %vm1540
      %v1542 = vsel %vm1541, %v1533, %v1538
      %v1543 = vmul.f32 %v1509, %v1532
      %v1544 = vmul.f32 %v1510, %v1542
      %v1545 = vld [vmem:[%s11] sm:$0x1]
      %v1547 = vperm.slane %v1545, 0
      %v1549 = vmul.f32 %v1543, %v1547
      %v1550 = vmul.f32 %v1544, %v1547
      %v1551 = vld [vmem:[%s12] sm:$0x1]
      %v1553 = vperm.slane %v1551, 0
      %v1555 = vadd.f32 %v1549, %v1553
      %v1556 = vadd.f32 %v1550, %v1553
      %v1557 = vpack.c.bf16 %v1556, %v1555
      %v1558 = vld [vmem:[%s13] sm:$0xff]
      %v1559 = vld [vmem:[%s13 + $0x8] sm:$0xff]
      %v1560 = vld [vmem:[%s13 + $0x10] sm:$0xff]
      %v1561 = vld [vmem:[%s13 + $0x18] sm:$0xff]
      %v1562 = vld [vmem:[%s13 + $0x20] sm:$0xff]
      %v1563 = vld [vmem:[%s13 + $0x28] sm:$0xff]
      %v1564 = vld [vmem:[%s13 + $0x30] sm:$0xff]
      %v1565 = vld [vmem:[%s13 + $0x38] sm:$0xff]
      %v1566 = vld [vmem:[%s14] sm:$0x3]
      %v1568 = vperm.slane %v1566, 0
      %v1569 = vperm.slane %v1566, 1
      %v1580 = vunpack.c.l.b16 %v1558
      %v1581 = vunpack.c.h.b16 %v1558
      %v1582 = vunpack.c.l.b16 %v1559
      %v1583 = vunpack.c.h.b16 %v1559
      %v1584 = vunpack.c.l.b16 %v1560
      %v1585 = vunpack.c.h.b16 %v1560
      %v1586 = vunpack.c.l.b16 %v1561
      %v1587 = vunpack.c.h.b16 %v1561
      %v1588 = vunpack.c.l.b16 %v1562
      %v1589 = vunpack.c.h.b16 %v1562
      %v1590 = vunpack.c.l.b16 %v1563
      %v1591 = vunpack.c.h.b16 %v1563
      %v1592 = vunpack.c.l.b16 %v1564
      %v1593 = vunpack.c.h.b16 %v1564
      %v1594 = vunpack.c.l.b16 %v1565
      %v1595 = vunpack.c.h.b16 %v1565
      %v1596 = vpack.c.b16 %v1582, %v1580
      %v1597 = vpack.c.b16 %v1583, %v1581
      %v1598 = vpack.c.b16 %v1586, %v1584
      %v1599 = vpack.c.b16 %v1587, %v1585
      %v1600 = vpack.c.b16 %v1590, %v1588
      %v1601 = vpack.c.b16 %v1591, %v1589
      %v1602 = vpack.c.b16 %v1594, %v1592
      %v1603 = vpack.c.b16 %v1595, %v1593
      %v1613 = vsel %vm711, %v1557, 0
      %1615 = vmatpush.bf16.msra.mxu0 0
      %1616 = vmatpush.bf16.msra.mxu0 0
      %1617 = vmatpush.bf16.msra.mxu0 0
      %1618 = vmatpush.bf16.msra.mxu0 0
      %1619 = vmatpush.bf16.msra.mxu0 %v1602
      %1620 = vmatpush.bf16.msra.mxu0 %v1600
      %1621 = vmatpush.bf16.msra.mxu0 %v1598
      %1622 = vmatpush.bf16.msra.mxu0 %v1596
      %1623 = vmatmul.bf16.gmra.mxu0 %v1613
      %v1624 = vpop.f32.mrf.mxu0
      %v1625 = vadd.f32 %v1568, %v1624
      %v1626 = vpop.f32.mrf.mxu0
      %v1627 = vadd.f32 %v1568, %v1626
      %1628 = vdwg.mxu0
      %1629 = vmatpush.bf16.msra.mxu0 0
      %1630 = vmatpush.bf16.msra.mxu0 0
      %1631 = vmatpush.bf16.msra.mxu0 0
      %1632 = vmatpush.bf16.msra.mxu0 0
      %1633 = vmatpush.bf16.msra.mxu0 %v1603
      %1634 = vmatpush.bf16.msra.mxu0 %v1601
      %1635 = vmatpush.bf16.msra.mxu0 %v1599
      %1636 = vmatpush.bf16.msra.mxu0 %v1597
      %1637 = vmatmul.bf16.gmra.mxu0 %v1613
      %v1638 = vpop.f32.mrf.mxu0
      %v1639 = vadd.f32 %v1569, %v1638
      %v1640 = vpop.f32.mrf.mxu0
      %v1641 = vadd.f32 %v1569, %v1640
      %1642 = vdwg.mxu0
      %v1643 = vmul.f32 %v1625, 0.5
      %v1644 = vmul.f32 %v1639, 0.5
      %v1645 = vmul.f32 %v1627, 0.5
      %v1646 = vmul.f32 %v1641, 0.5
      %v1647 = vmul.f32 %v1625, 0.044715
      %v1648 = vmul.f32 %v1639, 0.044715
      %v1649 = vmul.f32 %v1627, 0.044715
      %v1650 = vmul.f32 %v1641, 0.044715
      %v1651 = vmul.f32 %v1647, %v1625
      %v1652 = vmul.f32 %v1648, %v1639
      %v1653 = vmul.f32 %v1649, %v1627
      %v1654 = vmul.f32 %v1650, %v1641
      %v1655 = vmul.f32 %v1651, %v1625
      %v1656 = vmul.f32 %v1652, %v1639
      %v1657 = vmul.f32 %v1653, %v1627
      %v1658 = vmul.f32 %v1654, %v1641
      %v1659 = vadd.f32 %v1625, %v1655
      %v1660 = vadd.f32 %v1639, %v1656
      %v1661 = vadd.f32 %v1627, %v1657
      %v1662 = vadd.f32 %v1641, %v1658
      %v1663 = vmul.f32 %v1659, 0.7978846
      %v1664 = vmul.f32 %v1660, 0.7978846
      %v1665 = vmul.f32 %v1661, 0.7978846
      %v1666 = vmul.f32 %v1662, 0.7978846
      %v1667 = vtanh.pop %v1663
      %v1668 = vtanh.pop %v1664
      %v1669 = vtanh.pop %v1665
      %v1670 = vtanh.pop %v1666
      %v1671 = vadd.f32 %v1667, 1.0
      %v1672 = vadd.f32 %v1668, 1.0
      %v1673 = vadd.f32 %v1669, 1.0
      %v1674 = vadd.f32 %v1670, 1.0
      %v1675 = vmul.f32 %v1643, %v1671
      %v1676 = vmul.f32 %v1644, %v1672
      %v1677 = vmul.f32 %v1645, %v1673
      %v1678 = vmul.f32 %v1646, %v1674
      %v1679 = vpack.c.bf16 %v1677, %v1675
      %v1680 = vpack.c.bf16 %v1678, %v1676
      %v1681 = vld [vmem:[%s15] sm:$0xf]
      %v1682 = vld [vmem:[%s15 + $0x4] sm:$0xf]
      %v1683 = vld [vmem:[%s15 + $0x8] sm:$0xf]
      %v1684 = vld [vmem:[%s15 + $0xc] sm:$0xf]
      %v1685 = vld [vmem:[%s15 + $0x10] sm:$0xf]
      %v1686 = vld [vmem:[%s15 + $0x14] sm:$0xf]
      %v1687 = vld [vmem:[%s15 + $0x18] sm:$0xf]
      %v1688 = vld [vmem:[%s15 + $0x1c] sm:$0xf]
      %v1689 = vld [vmem:[%s15 + $0x20] sm:$0xf]
      %v1690 = vld [vmem:[%s15 + $0x24] sm:$0xf]
      %v1691 = vld [vmem:[%s15 + $0x28] sm:$0xf]
      %v1692 = vld [vmem:[%s15 + $0x2c] sm:$0xf]
      %v1693 = vld [vmem:[%s15 + $0x30] sm:$0xf]
      %v1694 = vld [vmem:[%s15 + $0x34] sm:$0xf]
      %v1695 = vld [vmem:[%s15 + $0x38] sm:$0xf]
      %v1696 = vld [vmem:[%s15 + $0x3c] sm:$0xf]
      %v1697 = vld [vmem:[%s15 + $0x40] sm:$0xf]
      %v1698 = vld [vmem:[%s15 + $0x44] sm:$0xf]
      %v1699 = vld [vmem:[%s15 + $0x48] sm:$0xf]
      %v1700 = vld [vmem:[%s15 + $0x4c] sm:$0xf]
      %v1701 = vld [vmem:[%s15 + $0x50] sm:$0xf]
      %v1702 = vld [vmem:[%s15 + $0x54] sm:$0xf]
      %v1703 = vld [vmem:[%s15 + $0x58] sm:$0xf]
      %v1704 = vld [vmem:[%s15 + $0x5c] sm:$0xf]
      %v1705 = vld [vmem:[%s15 + $0x60] sm:$0xf]
      %v1706 = vld [vmem:[%s15 + $0x64] sm:$0xf]
      %v1707 = vld [vmem:[%s15 + $0x68] sm:$0xf]
      %v1708 = vld [vmem:[%s15 + $0x6c] sm:$0xf]
      %v1709 = vld [vmem:[%s15 + $0x70] sm:$0xf]
      %v1710 = vld [vmem:[%s15 + $0x74] sm:$0xf]
      %v1711 = vld [vmem:[%s15 + $0x78] sm:$0xf]
      %v1712 = vld [vmem:[%s15 + $0x7c] sm:$0xf]
      %v1745 = vunpack.c.l.b16 %v1681
      %v1746 = vunpack.c.l.b16 %v1682
      %v1747 = vunpack.c.l.b16 %v1683
      %v1748 = vunpack.c.l.b16 %v1684
      %v1749 = vunpack.c.l.b16 %v1685
      %v1750 = vunpack.c.l.b16 %v1686
      %v1751 = vunpack.c.l.b16 %v1687
      %v1752 = vunpack.c.l.b16 %v1688
      %v1753 = vunpack.c.l.b16 %v1689
      %v1754 = vunpack.c.l.b16 %v1690
      %v1755 = vunpack.c.l.b16 %v1691
      %v1756 = vunpack.c.l.b16 %v1692
      %v1757 = vunpack.c.l.b16 %v1693
      %v1758 = vunpack.c.l.b16 %v1694
      %v1759 = vunpack.c.l.b16 %v1695
      %v1760 = vunpack.c.l.b16 %v1696
      %v1761 = vunpack.c.l.b16 %v1697
      %v1762 = vunpack.c.l.b16 %v1698
      %v1763 = vunpack.c.l.b16 %v1699
      %v1764 = vunpack.c.l.b16 %v1700
      %v1765 = vunpack.c.l.b16 %v1701
      %v1766 = vunpack.c.l.b16 %v1702
      %v1767 = vunpack.c.l.b16 %v1703
      %v1768 = vunpack.c.l.b16 %v1704
      %v1769 = vunpack.c.l.b16 %v1705
      %v1770 = vunpack.c.l.b16 %v1706
      %v1771 = vunpack.c.l.b16 %v1707
      %v1772 = vunpack.c.l.b16 %v1708
      %v1773 = vunpack.c.l.b16 %v1709
      %v1774 = vunpack.c.l.b16 %v1710
      %v1775 = vunpack.c.l.b16 %v1711
      %v1776 = vunpack.c.l.b16 %v1712
      %v1777 = vpack.c.b16 %v1746, %v1745
      %v1778 = vpack.c.b16 %v1748, %v1747
      %v1779 = vpack.c.b16 %v1750, %v1749
      %v1780 = vpack.c.b16 %v1752, %v1751
      %v1781 = vpack.c.b16 %v1754, %v1753
      %v1782 = vpack.c.b16 %v1756, %v1755
      %v1783 = vpack.c.b16 %v1758, %v1757
      %v1784 = vpack.c.b16 %v1760, %v1759
      %v1785 = vpack.c.b16 %v1762, %v1761
      %v1786 = vpack.c.b16 %v1764, %v1763
      %v1787 = vpack.c.b16 %v1766, %v1765
      %v1788 = vpack.c.b16 %v1768, %v1767
      %v1789 = vpack.c.b16 %v1770, %v1769
      %v1790 = vpack.c.b16 %v1772, %v1771
      %v1791 = vpack.c.b16 %v1774, %v1773
      %v1792 = vpack.c.b16 %v1776, %v1775
      %1809 = vmatpush.bf16.msra.mxu0 %v1784
      %1810 = vmatpush.bf16.msra.mxu0 %v1783
      %1811 = vmatpush.bf16.msra.mxu0 %v1782
      %1812 = vmatpush.bf16.msra.mxu0 %v1781
      %1813 = vmatpush.bf16.msra.mxu0 %v1780
      %1814 = vmatpush.bf16.msra.mxu0 %v1779
      %1815 = vmatpush.bf16.msra.mxu0 %v1778
      %1816 = vmatpush.bf16.msra.mxu0 %v1777
      %1817 = vmatmul.bf16.gmra.mxu0 %v1679
      %v1818 = vpop.f32.mrf.mxu0
      %v1819 = vadd.f32 0.0, %v1818
      %v1820 = vpop.f32.mrf.mxu0
      %v1821 = vadd.f32 0.0, %v1820
      %1822 = vdwg.mxu0
      %1823 = vmatpush.bf16.msra.mxu0 %v1792
      %1824 = vmatpush.bf16.msra.mxu0 %v1791
      %1825 = vmatpush.bf16.msra.mxu0 %v1790
      %1826 = vmatpush.bf16.msra.mxu0 %v1789
      %1827 = vmatpush.bf16.msra.mxu0 %v1788
      %1828 = vmatpush.bf16.msra.mxu0 %v1787
      %1829 = vmatpush.bf16.msra.mxu0 %v1786
      %1830 = vmatpush.bf16.msra.mxu0 %v1785
      %1831 = vmatmul.bf16.gmra.mxu0 %v1680
      %v1832 = vpop.f32.mrf.mxu0
      %v1833 = vadd.f32 %v1819, %v1832
      %v1834 = vpop.f32.mrf.mxu0
      %v1835 = vadd.f32 %v1821, %v1834
      %1836 = vdwg.mxu0
      %v1837 = vadd.f32 %v1499, %v1833
      %v1838 = vadd.f32 %v1500, %v1835
      %v1839 = vld [vmem:[%s16] sm:$0x1]
      %v1841 = vperm.slane %v1839, 0
      %v1843 = vadd.f32 %v1837, %v1841
      %v1844 = vadd.f32 %v1838, %v1841
      %v1845 = vsel %vm711, %v1843, 0.0
      %1846 = vadd.xlane.f32.xlu0 %v1845
      %v1847 = vpop.xlane.xlu0 %1846
      %v1848 = vsel %vm762, %v1844, 0.0
      %1849 = vadd.xlane.f32.xlu0 %v1848
      %v1850 = vpop.xlane.xlu0 %1849
      %v1851 = vmul.f32 %v1847, %v772
      %v1852 = vmul.f32 %v1850, %v772
      %v1853 = vsub.f32 %v1843, %v1851
      %v1854 = vsub.f32 %v1844, %v1852
      %v1855 = vmul.f32 %v1853, %v1853
      %v1856 = vmul.f32 %v1854, %v1854
      %v1857 = vsel %vm711, %v1855, 0.0
      %1858 = vadd.xlane.f32.xlu0 %v1857
      %v1859 = vpop.xlane.xlu0 %1858
      %v1860 = vsel %vm762, %v1856, 0.0
      %1861 = vadd.xlane.f32.xlu0 %v1860
      %v1862 = vpop.xlane.xlu0 %1861
      %v1863 = vmul.f32 %v1859, %v772
      %v1864 = vmul.f32 %v1862, %v772
      %v1865 = vadd.f32 %v1863, 1e-06
      %v1866 = vadd.f32 %v1864, 1e-06
      %v1867 = vrsqrt.pop %v1865
      %v1868 = vmul.f32 %v1867, %v1865
      %v1869 = vmul.f32 %v1868, %v1867
      %v1870 = vmul.f32 0.5, %v1869
      %v1871 = vsub.f32 1.5, %v1870
      %v1872 = vmul.f32 %v1867, %v1871
      %vm1873 = vweird.f32 %v1865
      %vm1874 = vweird.f32 %v1867
      %vm1875 = vmor %vm1873, %vm1874
      %v1876 = vsel %vm1875, %v1867, %v1872
      %v1877 = vrsqrt.pop %v1866
      %v1878 = vmul.f32 %v1877, %v1866
      %v1879 = vmul.f32 %v1878, %v1877
      %v1880 = vmul.f32 0.5, %v1879
      %v1881 = vsub.f32 1.5, %v1880
      %v1882 = vmul.f32 %v1877, %v1881
      %vm1883 = vweird.f32 %v1866
      %vm1884 = vweird.f32 %v1877
      %vm1885 = vmor %vm1883, %vm1884
      %v1886 = vsel %vm1885, %v1877, %v1882
      %v1887 = vmul.f32 %v1853, %v1876
      %v1888 = vmul.f32 %v1854, %v1886
      %v1889 = vld [vmem:[%s17] sm:$0x1]
      %v1891 = vperm.slane %v1889, 0
      %v1893 = vmul.f32 %v1887, %v1891
      %v1894 = vmul.f32 %v1888, %v1891
      %v1895 = vld [vmem:[%s18] sm:$0x1]
      %v1897 = vperm.slane %v1895, 0
      %v1899 = vadd.f32 %v1893, %v1897
      %v1900 = vadd.f32 %v1894, %v1897
      %v1901 = vpack.c.bf16 %v1899, %v1899
      %v1902 = vpack.c.bf16 %v1900, %v1900
      %1903 = vst.msk [vmem:[%s602] sm:$0xf] %vm746, %v1901
      %1904 = vst.msk [vmem:[%s602 + $0x4] sm:$0x1] %vm742, %v1902
      %p1905 = scmp.lt.s32.totalorder %s30, 3
      %s1906 = scalar_select %p1905, %s30, 3
      %s1907 = smul.addr %s1906, 2
      %s1908 = smul.addr %s1907, 4
      %s1909 = scalar_lea.vmem %s19, %s1908
      // Predicated region
      $region97: #{tpu_custom_call.1} parent=95 // pred_check
        %p1910 = pneg %p452
      $region98: #{tpu_custom_call.1} parent=95 // pred_check_branch
        %1912 = sbr.rel (%p1910) target = $region100
      $region99: #{tpu_custom_call.1} parent=95 // pred_region
        _
      $region100: #{tpu_custom_call.1} parent=95 // pred_fallthru
        _
    $region96: #{tpu_custom_call.1} parent=5 // pred_fallthru
      _
    %p1913 = scmp.le.s32.totalorder 2, %s25
    // Predicated region
    $region101: #{tpu_custom_call.1} parent=5 // pred_check
      %p1914 = pneg %p1913
    $region102: #{tpu_custom_call.1} parent=5 // pred_check_branch
      %1916 = sbr.rel (%p1914) target = $region104
    $region103: #{tpu_custom_call.1} parent=5 // pred_region
      %s1917 = ssub.s32 %s25, 2
      // Predicated region
      $region105: #{tpu_custom_call.1} parent=103 // pred_check
        %p1918 = pneg %p458
      $region106: #{tpu_custom_call.1} parent=103 // pred_check_branch
        %1920 = sbr.rel (%p1918) target = $region108
      $region107: #{tpu_custom_call.1} parent=103 // pred_region
        %p1921 = scmp.lt.s32.totalorder %s31, 3
        %s1922 = scalar_select %p1921, %s31, 3
        %s1923 = smul.addr %s1922, 2
        %s1924 = smul.addr %s1923, 4
        %s1925 = scalar_lea.vmem %s19, %s1924
      $region108: #{tpu_custom_call.1} parent=103 // pred_fallthru
        _
    $region104: #{tpu_custom_call.1} parent=5 // pred_fallthru
      _
  $region6: #{tpu_custom_call.1} parent=0 // loop_footer
    %s29 = sadd.s32 1, %s25
  $region7: #{tpu_custom_call.1} parent=0 // loop_footer_branch
    %24 = sbr.rel target = $region3
  $region8: #{tpu_custom_call.1} parent=0 // loop_exit
    _

</llo_original>
